<compile_context>
chip_gen: v7x
topology: tpu7x:2x2x1
jax: 0.10.0
libtpu: 0.0.40
codegen_flags: <defaults>
</compile_context>

<pallas_src>
import functools

import jax
import jax.numpy as jnp
from jax.experimental import pallas as pl
from jax.experimental.pallas import tpu as pltpu

BN_EPS = 1e-5
MAX_TM = 1024


# ----------------------------- Pallas kernel ------------------------------- #
def _fused_gemm_bn_relu_kernel(x_ref, w_ref, s_ref, b_ref, o_ref):
    # x: (TM, Cin) bf16   w: (Cin, Cout) bf16   s, b: (1, Cout) f32
    acc = jnp.dot(x_ref[...], w_ref[...], preferred_element_type=jnp.float32)
    y = acc * s_ref[...] + b_ref[...]            # folded BatchNorm (eval mode)
    o_ref[...] = jnp.maximum(y, 0.0).astype(o_ref.dtype)


def _pick_row_tile(m, max_tm=MAX_TM):
    """Largest multiple-of-8 row tile <= max_tm that minimizes padding of m."""
    m8 = -(-m // 8) * 8
    if m8 <= max_tm:
        return m8
    best_tm, best_pad = max_tm, (-m) % max_tm
    for tm in range(max_tm, 127, -8):
        pad = (-m) % tm
        if pad < best_pad:
            best_tm, best_pad = tm, pad
            if pad == 0:
                break
    return best_tm


def conv1x1_bn_relu(x_nhwc, w_oihw, scale, bias):
    """1x1 Conv(bias=False) + folded BatchNorm + ReLU as one fused Pallas GEMM."""
    n, h, w, cin = x_nhwc.shape
    cout = w_oihw.shape[0]
    m = n * h * w
    a = x_nhwc.reshape(m, cin).astype(jnp.bfloat16)
    # torch weight (Cout, Cin, 1, 1) -> (Cin, Cout), bf16 for the MXU
    wmat = jnp.transpose(w_oihw, (2, 3, 1, 0)).reshape(cin, cout)
    wmat = wmat.astype(jnp.bfloat16)

    tm = _pick_row_tile(m)
    m_pad = -(-m // tm) * tm
    if m_pad != m:                                # at most tm-8 rows, usually ~0
        a = jnp.pad(a, ((0, m_pad - m), (0, 0)))

    out = pl.pallas_call(
        _fused_gemm_bn_relu_kernel,
        grid=(m_pad // tm,),
        in_specs=[
            pl.BlockSpec((tm, cin), lambda i: (i, 0)),
            pl.BlockSpec((cin, cout), lambda i: (0, 0)),
            pl.BlockSpec((1, cout), lambda i: (0, 0)),
            pl.BlockSpec((1, cout), lambda i: (0, 0)),
        ],
        out_specs=pl.BlockSpec((tm, cout), lambda i: (i, 0)),
        out_shape=jax.ShapeDtypeStruct((m_pad, cout), jnp.float32),
        compiler_params=pltpu.CompilerParams(
            dimension_semantics=("parallel",)),
    )(a, wmat, scale[None, :].astype(jnp.float32),
      bias[None, :].astype(jnp.float32))
    return out[:m].reshape(n, h, w, cout)


# ------------------------------ JAX glue ----------------------------------- #
def pixel_shuffle_nhwc(x, r):
    # Matches torch.nn.PixelShuffle: out[n,c,h*r+i,w*r+j] = in[n, c*r*r+i*r+j, h, w]
    n, h, w, c = x.shape
    co = c // (r * r)
    x = x.reshape(n, h, w, co, r, r)
    x = jnp.transpose(x, (0, 1, 4, 2, 5, 3))
    return x.reshape(n, h * r, w * r, co)


def crop_nhwc(x, height, width):
    # F.pad with negative left/top pads == drop leading columns / rows.
    _, h, w, _ = x.shape
    return x[:, max(0, h - height):, max(0, w - width):, :]


def deconv_unit_crop(params, x_nchw, *, out_size, upscale_factor=2):
    # bf16 early: halves the bytes moved by the shuffle/crop and the GEMM DMA.
    x = jnp.transpose(x_nchw.astype(jnp.bfloat16), (0, 2, 3, 1))   # NCHW->NHWC
    x = pixel_shuffle_nhwc(x, upscale_factor)
    x = crop_nhwc(x, out_size[0], out_size[1])
    y = conv1x1_bn_relu(x, params["w"], params["scale"], params["bias"])
    return jnp.transpose(y, (0, 3, 1, 2))                          # NHWC->NCHW


# --------------------------- params & reference ---------------------------- #
def init_params(key, in_chs, out_chs, upscale_factor=2):
    cin = in_chs // (upscale_factor * upscale_factor)
    kw, kg, kb, km, kv = jax.random.split(key, 5)
    w = 0.1 * jax.random.normal(kw, (out_chs, cin, 1, 1), jnp.float32)
    gamma = 1.0 + 0.1 * jax.random.normal(kg, (out_chs,), jnp.float32)
    beta = 0.1 * jax.random.normal(kb, (out_chs,), jnp.float32)
    mean = 0.1 * jax.random.normal(km, (out_chs,), jnp.float32)
    var = 1.0 + 0.1 * jnp.abs(jax.random.normal(kv, (out_chs,), jnp.float32))
    scale = gamma / jnp.sqrt(var + BN_EPS)       # folded eval-mode BatchNorm
    bias = beta - mean * scale
    return {"w": w, "scale": scale, "bias": bias}


def reference_forward(params, x_nchw, *, out_size, upscale_factor=2):
    """Pure-JAX f32 reference of the same forward pass (no Pallas)."""
    x = jnp.transpose(x_nchw, (0, 2, 3, 1)).astype(jnp.float32)
    x = pixel_shuffle_nhwc(x, upscale_factor)
    x = crop_nhwc(x, out_size[0], out_size[1])
    wmat = jnp.transpose(params["w"], (2, 3, 1, 0)).reshape(x.shape[-1], -1)
    y = jnp.einsum("nhwc,cf->nhwf", x, wmat)
    y = jnp.maximum(y * params["scale"] + params["bias"], 0.0)
    return jnp.transpose(y, (0, 3, 1, 2))


# --------------------------------- main ------------------------------------ #
if __name__ == "__main__":
    key = jax.random.PRNGKey(0)
    pkey, xkey = jax.random.split(key)
    in_chs, out_chs, r = 64, 64, 2
    out_size = (30, 31)   # shuffled spatial is 32x32 -> exercises crop in H and W
    params = init_params(pkey, in_chs, out_chs, r)
    x = jax.random.normal(xkey, (2, in_chs, 16, 16), jnp.float32)

    fwd = jax.jit(functools.partial(deconv_unit_crop,
                                    out_size=out_size, upscale_factor=r))
    y = fwd(params, x)
    jax.block_until_ready(y)

    assert y.shape == (2, out_chs, out_size[0], out_size[1]), y.shape
    y_ref = reference_forward(params, x, out_size=out_size, upscale_factor=r)
    err = float(jnp.max(jnp.abs(y - y_ref)))
    assert err < 3e-2, f"max abs err {err}"       # bf16 MXU operands vs f32 ref
    print("KERNEL_OK")
</pallas_src>

<mosaic_0001>
module attributes {stable_mosaic.version = 11 : i64} {
  func.func @_fused_gemm_bn_relu_kernel(%arg0: i32, %arg1: memref<936x16xbf16, #tpu.memory_space<vmem>>, %arg2: memref<16x64xbf16, #tpu.memory_space<vmem>>, %arg3: memref<1x64xf32, #tpu.memory_space<vmem>>, %arg4: memref<1x64xf32, #tpu.memory_space<vmem>>, %arg5: memref<936x64xf32, #tpu.memory_space<vmem>>) attributes {dimension_semantics = [#tpu.dimension_semantics<parallel>], iteration_bounds = array<i64: 2>, scalar_prefetch = 0 : i64, scratch_operands = 0 : i64, tpu.core_type = #tpu.core_type<tc>, window_params = [{transform_indices = @transform_0, window_bounds = array<i64: 936, 16>}, {pipeline_mode = #tpu.pipeline_mode<synchronous>, transform_indices = @transform_1, window_bounds = array<i64: 16, 64>}, {pipeline_mode = #tpu.pipeline_mode<synchronous>, transform_indices = @transform_2, window_bounds = array<i64: 1, 64>}, {pipeline_mode = #tpu.pipeline_mode<synchronous>, transform_indices = @transform_3, window_bounds = array<i64: 1, 64>}, {transform_indices = @transform_4, window_bounds = array<i64: 936, 64>}]} {
    %c0 = arith.constant 0 : index
    %c0_0 = arith.constant 0 : index
    %0 = vector.load %arg1[%c0, %c0_0] : memref<936x16xbf16, #tpu.memory_space<vmem>>, vector<936x16xbf16>
    %c0_1 = arith.constant 0 : index
    %c0_2 = arith.constant 0 : index
    %1 = vector.load %arg2[%c0_1, %c0_2] : memref<16x64xbf16, #tpu.memory_space<vmem>>, vector<16x64xbf16>
    %cst = arith.constant dense<0.000000e+00> : vector<936x64xf32>
    %2 = tpu.matmul %0, %1, %cst {dimension_numbers = #tpu.dot_dimension_numbers<[1], [0], [0], [1], [0, 0, 1, 1], [], []>} : vector<936x16xbf16>, vector<16x64xbf16>, vector<936x64xf32> -> vector<936x64xf32>
    %c0_3 = arith.constant 0 : index
    %c0_4 = arith.constant 0 : index
    %3 = vector.load %arg3[%c0_3, %c0_4] : memref<1x64xf32, #tpu.memory_space<vmem>>, vector<1x64xf32>
    %4 = vector.broadcast %3 : vector<1x64xf32> to vector<936x64xf32>
    %5 = arith.mulf %2, %4 : vector<936x64xf32>
    %c0_5 = arith.constant 0 : index
    %c0_6 = arith.constant 0 : index
    %6 = vector.load %arg4[%c0_5, %c0_6] : memref<1x64xf32, #tpu.memory_space<vmem>>, vector<1x64xf32>
    %7 = vector.broadcast %6 : vector<1x64xf32> to vector<936x64xf32>
    %8 = arith.addf %5, %7 : vector<936x64xf32>
    %cst_7 = arith.constant 0.000000e+00 : f32
    %9 = vector.broadcast %cst_7 : f32 to vector<936x64xf32>
    %10 = arith.maximumf %8, %9 : vector<936x64xf32>
    %c0_8 = arith.constant 0 : index
    %c0_9 = arith.constant 0 : index
    %11 = vector.load %arg5[%c0_8, %c0_9] : memref<936x64xf32, #tpu.memory_space<vmem>>, vector<936x64xf32>
    tpu.vector_store %arg5[%c0_8, %c0_9], %10 {strides = array<i32>} : memref<936x64xf32, #tpu.memory_space<vmem>>, vector<936x64xf32>,
    return
  }
  func.func @transform_0(%arg0: i32) -> (i32, i32) {
    %c0_i32 = arith.constant 0 : i32
    %c0_i32_0 = arith.constant 0 : i32
    return %arg0, %c0_i32 : i32, i32
  }
  func.func @transform_1(%arg0: i32) -> (i32, i32) {
    %c0_i32 = arith.constant 0 : i32
    %c0_i32_0 = arith.constant 0 : i32
    %c0_i32_1 = arith.constant 0 : i32
    return %c0_i32, %c0_i32_0 : i32, i32
  }
  func.func @transform_2(%arg0: i32) -> (i32, i32) {
    %c0_i32 = arith.constant 0 : i32
    %c0_i32_0 = arith.constant 0 : i32
    %c0_i32_1 = arith.constant 0 : i32
    return %c0_i32, %c0_i32_0 : i32, i32
  }
  func.func @transform_3(%arg0: i32) -> (i32, i32) {
    %c0_i32 = arith.constant 0 : i32
    %c0_i32_0 = arith.constant 0 : i32
    %c0_i32_1 = arith.constant 0 : i32
    return %c0_i32, %c0_i32_0 : i32, i32
  }
  func.func @transform_4(%arg0: i32) -> (i32, i32) {
    %c0_i32 = arith.constant 0 : i32
    %c0_i32_0 = arith.constant 0 : i32
    return %arg0, %c0_i32 : i32, i32
  }
}

</mosaic_0001>

<llo_original>
// kernel: deconv_unit_crop.1
$region0: #{deconv_unit_crop.1}
  #allocation0 [shape = 'u32[]', space=smem, size = 0x4, offset = 0x4, fixed_abs, tag = 'smem constant byte address 0x4 - core index']
  #allocation1 [shape = 'u32[144,128]{1,0:T(1,128)}', space=vmem, size = 0x12000, scoped, tag = 'internal scratch']
  %s0 = inlined_call_operand.vmem [shape: bf16[1872,16], index: 0, kind: input, shape index: {}]
  %s1 = inlined_call_operand.vmem [shape: bf16[16,64], index: 1, kind: input, shape index: {}]
  %s2 = inlined_call_operand.vmem [shape: f32[1,64], index: 2, kind: input, shape index: {}]
  %s3 = inlined_call_operand.vmem [shape: f32[1,64], index: 3, kind: input, shape index: {}]
  %s4 = inlined_call_operand.vmem [shape: f32[1872,64], index: 4, kind: output, shape index: {}]
  %s5 = sld [smem:[#allocation0]]
  $region49: #{deconv_unit_crop.1} parent=0
    _
  %s7 = ssub.s32 1, %s5
  %s8 = scalar_select 0, %s7, %s5
  loop: start=0, step=1, limit=4
  $region2: #{deconv_unit_crop.1} parent=0 // loop_pre_header
    _
  $region3: #{deconv_unit_crop.1} parent=0 // loop_header
    %s10 = sphi 0, %s14
    %p11 = scmp.ge.s32.totalorder %s10, 4
    %s20 = sphi 0, %s22
    %s23 = sphi 0, %s20
    %s24 = sphi 0, %s23
    %s40 = sphi 0, %s24
    %s44 = sphi 0, %s44
    %s46 = sphi 0, %s44
    %s47 = sphi 0, %s46
    %s61 = sphi 0, %s47
    %s65 = sphi 0, %s65
    %s67 = sphi 0, %s65
    %s68 = sphi 0, %s67
    %s82 = sphi 0, %s68
    %s86 = sphi 0, %s86
    %s88 = sphi 0, %s86
    %s89 = sphi 0, %s88
    %s103 = sphi 0, %s89
    %s109 = sphi 0, %s111
    %s112 = sphi 0, %s109
    %s113 = sphi 0, %s112
    %s129 = sphi 0, %s113
  $region4: #{deconv_unit_crop.1} parent=0 // loop_header_branch
    %13 = sbr.rel (%p11) target = $region8
  $region5: #{deconv_unit_crop.1} parent=0 // loop_body
    %s15 = ssub.s32 %s10, 1
    %s16 = ssub.s32 %s10, 2
    %s17 = sadd.s32 %s10, 1
    %s18 = ssub.s32 %s10, %s17
    %p19 = scmp.eq.s32.totalorder %s18, 0
    %s21 = sadd.s32 %s20, 1
    %s22 = scalar_select %p19, %s20, %s21
    %p25 = pneg %p19
    %p26 = scmp.eq.s32.totalorder %s10, 1
    %p27 = por %p25, %p26
    %p28 = scmp.ne.s32.totalorder %s20, %s23
    %p29 = scmp.eq.s32.totalorder %s10, 0
    %p30 = por %p28, %p29
    %p31 = scmp.ne.s32.totalorder %s20, %s23
    %p32 = scmp.eq.s32.totalorder %s15, 1
    %p33 = por %p31, %p32
    %p34 = scmp.ne.s32.totalorder %s23, %s24
    %p35 = scmp.eq.s32.totalorder %s15, 0
    %p36 = por %p34, %p35
    %p37 = scmp.ne.s32.totalorder %s23, %s24
    %p38 = scmp.eq.s32.totalorder %s16, 1
    %p39 = por %p37, %p38
    %p41 = scmp.ne.s32.totalorder %s24, %s40
    %p42 = scmp.eq.s32.totalorder %s16, 0
    %p43 = por %p41, %p42
    %s45 = sadd.s32 %s44, 1
    %p48 = scmp.eq.s32.totalorder %s10, 1
    %p49 = scmp.ne.s32.totalorder %s44, %s46
    %p50 = scmp.eq.s32.totalorder %s10, 0
    %p51 = por %p49, %p50
    %p52 = scmp.ne.s32.totalorder %s44, %s46
    %p53 = scmp.eq.s32.totalorder %s15, 1
    %p54 = por %p52, %p53
    %p55 = scmp.ne.s32.totalorder %s46, %s47
    %p56 = scmp.eq.s32.totalorder %s15, 0
    %p57 = por %p55, %p56
    %p58 = scmp.ne.s32.totalorder %s46, %s47
    %p59 = scmp.eq.s32.totalorder %s16, 1
    %p60 = por %p58, %p59
    %p62 = scmp.ne.s32.totalorder %s47, %s61
    %p63 = scmp.eq.s32.totalorder %s16, 0
    %p64 = por %p62, %p63
    %s66 = sadd.s32 %s65, 1
    %p69 = scmp.eq.s32.totalorder %s10, 1
    %p70 = scmp.ne.s32.totalorder %s65, %s67
    %p71 = scmp.eq.s32.totalorder %s10, 0
    %p72 = por %p70, %p71
    %p73 = scmp.ne.s32.totalorder %s65, %s67
    %p74 = scmp.eq.s32.totalorder %s15, 1
    %p75 = por %p73, %p74
    %p76 = scmp.ne.s32.totalorder %s67, %s68
    %p77 = scmp.eq.s32.totalorder %s15, 0
    %p78 = por %p76, %p77
    %p79 = scmp.ne.s32.totalorder %s67, %s68
    %p80 = scmp.eq.s32.totalorder %s16, 1
    %p81 = por %p79, %p80
    %p83 = scmp.ne.s32.totalorder %s68, %s82
    %p84 = scmp.eq.s32.totalorder %s16, 0
    %p85 = por %p83, %p84
    %s87 = sadd.s32 %s86, 1
    %p90 = scmp.eq.s32.totalorder %s10, 1
    %p91 = scmp.ne.s32.totalorder %s86, %s88
    %p92 = scmp.eq.s32.totalorder %s10, 0
    %p93 = por %p91, %p92
    %p94 = scmp.ne.s32.totalorder %s86, %s88
    %p95 = scmp.eq.s32.totalorder %s15, 1
    %p96 = por %p94, %p95
    %p97 = scmp.ne.s32.totalorder %s88, %s89
    %p98 = scmp.eq.s32.totalorder %s15, 0
    %p99 = por %p97, %p98
    %p100 = scmp.ne.s32.totalorder %s88, %s89
    %p101 = scmp.eq.s32.totalorder %s16, 1
    %p102 = por %p100, %p101
    %p104 = scmp.ne.s32.totalorder %s89, %s103
    %p105 = scmp.eq.s32.totalorder %s16, 0
    %p106 = por %p104, %p105
    %s107 = ssub.s32 %s10, %s17
    %p108 = scmp.eq.s32.totalorder %s107, 0
    %s110 = sadd.s32 %s109, 1
    %s111 = scalar_select %p108, %s109, %s110
    %p114 = pneg %p108
    %p115 = scmp.eq.s32.totalorder %s10, 1
    %p116 = por %p114, %p115
    %p117 = scmp.ne.s32.totalorder %s109, %s112
    %p118 = scmp.eq.s32.totalorder %s10, 0
    %p119 = por %p117, %p118
    %p120 = scmp.ne.s32.totalorder %s109, %s112
    %p121 = scmp.eq.s32.totalorder %s15, 1
    %p122 = por %p120, %p121
    %p123 = scmp.ne.s32.totalorder %s112, %s113
    %p124 = scmp.eq.s32.totalorder %s15, 0
    %p125 = por %p123, %p124
    %p126 = scmp.ne.s32.totalorder %s112, %s113
    %p127 = scmp.eq.s32.totalorder %s16, 1
    %p128 = por %p126, %p127
    %p130 = scmp.ne.s32.totalorder %s113, %s129
    %p131 = scmp.eq.s32.totalorder %s16, 0
    %p132 = por %p130, %p131
    %p133 = scmp.le.s32.totalorder 1, %s10
    %p134 = scmp.lt.s32.totalorder %s10, 3
    %p135 = pnand %p133, %p134
    %p136 = pneg %p135
    // Predicated region
    $region9: #{deconv_unit_crop.1} parent=5 // pred_check
      _
    $region10: #{deconv_unit_crop.1} parent=5 // pred_check_branch
      %138 = sbr.rel (%p135) target = $region12
    $region11: #{deconv_unit_crop.1} parent=5 // pred_region
      %s139 = ssub.s32 %s10, 1
      // Predicated region
      $region13: #{deconv_unit_crop.1} parent=11 // pred_check
        %p140 = pneg %p57
      $region14: #{deconv_unit_crop.1} parent=11 // pred_check_branch
        %142 = sbr.rel (%p140) target = $region16
      $region15: #{deconv_unit_crop.1} parent=11 // pred_region
        _
      $region16: #{deconv_unit_crop.1} parent=11 // pred_fallthru
        _
      // Predicated region
      $region17: #{deconv_unit_crop.1} parent=11 // pred_check
        %p143 = pneg %p78
      $region18: #{deconv_unit_crop.1} parent=11 // pred_check_branch
        %145 = sbr.rel (%p143) target = $region20
      $region19: #{deconv_unit_crop.1} parent=11 // pred_region
        _
      $region20: #{deconv_unit_crop.1} parent=11 // pred_fallthru
        _
      // Predicated region
      $region21: #{deconv_unit_crop.1} parent=11 // pred_check
        %p146 = pneg %p99
      $region22: #{deconv_unit_crop.1} parent=11 // pred_check_branch
        %148 = sbr.rel (%p146) target = $region24
      $region23: #{deconv_unit_crop.1} parent=11 // pred_region
        _
      $region24: #{deconv_unit_crop.1} parent=11 // pred_fallthru
        _
    $region12: #{deconv_unit_crop.1} parent=5 // pred_fallthru
      _
    %p149 = scmp.lt.s32.totalorder %s10, 2
    // Predicated region
    $region25: #{deconv_unit_crop.1} parent=5 // pred_check
      %p150 = pneg %p149
    $region26: #{deconv_unit_crop.1} parent=5 // pred_check_branch
      %152 = sbr.rel (%p150) target = $region28
    $region27: #{deconv_unit_crop.1} parent=5 // pred_region
      // Predicated region
      $region29: #{deconv_unit_crop.1} parent=27 // pred_check
        %p153 = pneg %p30
      $region30: #{deconv_unit_crop.1} parent=27 // pred_check_branch
        %155 = sbr.rel (%p153) target = $region32
      $region31: #{deconv_unit_crop.1} parent=27 // pred_region
        %s156 = smul.u32 117, %s10
        %p157 = scmp.lt.s32.totalorder %s156, 233
        %s158 = scalar_select %p157, %s156, 233
        %s159 = smul.addr %s158, 4
        %s160 = scalar_lea.vmem %s0, %s159
        %s161 = smul.u32 117, %s10
      $region32: #{deconv_unit_crop.1} parent=27 // pred_fallthru
        _
    $region28: #{deconv_unit_crop.1} parent=5 // pred_fallthru
      _
    %p162 = scmp.le.s32.totalorder 1, %s10
    %p163 = scmp.lt.s32.totalorder %s10, 3
    %p164 = pnand %p162, %p163
    %p165 = pneg %p164
    // Predicated region
    $region33: #{deconv_unit_crop.1} parent=5 // pred_check
      _
    $region34: #{deconv_unit_crop.1} parent=5 // pred_check_branch
      %167 = sbr.rel (%p164) target = $region36
    $region35: #{deconv_unit_crop.1} parent=5 // pred_region
      %s168 = ssub.s32 %s10, 1
      %s169 = smul.u32 117, %s15
      %p170 = scmp.lt.s32.totalorder %s169, 233
      %s171 = scalar_select %p170, %s169, 233
      %s172 = smul.addr %s171, 4
      %s173 = scalar_lea.vmem %s0, %s172
      %p174 = pneg %p36
      %p175 = pneg %p33
      %p176 = pneg %p57
      %p177 = pneg %p54
      %p178 = pneg %p78
      %p179 = pneg %p75
      %p180 = pneg %p99
      %p181 = pneg %p96
      %p182 = pneg %p125
      %p183 = pneg %p122
      %s184 = smul.u32 117, %s15
      %p185 = scmp.lt.s32.totalorder %s184, 233
      %s186 = scalar_select %p185, %s184, 233
      %s187 = smul.addr %s186, 8
      %s188 = scalar_lea.vmem %s4, %s187
      %s189 = smul.u32 117, %s15
      %p190 = scmp.lt.s32.totalorder %s189, 233
      %s191 = scalar_select %p190, %s189, 233
      %s192 = smul.addr %s191, 4
      %s193 = scalar_lea.vmem %s0, %s192
      %s194 = smul.u32 117, %s15
      %s195 = smul.u32 117, %s15
      %p196 = scmp.lt.s32.totalorder %s195, 233
      %s197 = scalar_select %p196, %s195, 233
      %s198 = smul.addr %s197, 8
      %s199 = scalar_lea.vmem %s4, %s198
      %s200 = smul.u32 117, %s15
      %v202 = vld [vmem:[%s193] sm:$0xf]
      %v203 = vld [vmem:[%s193 + $0x4] sm:$0xf]
      %v204 = vld [vmem:[%s193 + $0x8] sm:$0xf]
      %v205 = vld [vmem:[%s193 + $0xc] sm:$0xf]
      %v206 = vld [vmem:[%s193 + $0x10] sm:$0xf]
      %v207 = vld [vmem:[%s193 + $0x14] sm:$0xf]
      %v208 = vld [vmem:[%s193 + $0x18] sm:$0xf]
      %v209 = vld [vmem:[%s193 + $0x1c] sm:$0xf]
      %v210 = vld [vmem:[%s193 + $0x20] sm:$0xf]
      %v211 = vld [vmem:[%s193 + $0x24] sm:$0xf]
      %v212 = vld [vmem:[%s193 + $0x28] sm:$0xf]
      %v213 = vld [vmem:[%s193 + $0x2c] sm:$0xf]
      %v214 = vld [vmem:[%s193 + $0x30] sm:$0xf]
      %v215 = vld [vmem:[%s193 + $0x34] sm:$0xf]
      %v216 = vld [vmem:[%s193 + $0x38] sm:$0xf]
      %v217 = vld [vmem:[%s193 + $0x3c] sm:$0xf]
      %v218 = vld [vmem:[%s193 + $0x40] sm:$0xf]
      %v219 = vld [vmem:[%s193 + $0x44] sm:$0xf]
      %v220 = vld [vmem:[%s193 + $0x48] sm:$0xf]
      %v221 = vld [vmem:[%s193 + $0x4c] sm:$0xf]
      %v222 = vld [vmem:[%s193 + $0x50] sm:$0xf]
      %v223 = vld [vmem:[%s193 + $0x54] sm:$0xf]
      %v224 = vld [vmem:[%s193 + $0x58] sm:$0xf]
      %v225 = vld [vmem:[%s193 + $0x5c] sm:$0xf]
      %v226 = vld [vmem:[%s193 + $0x60] sm:$0xf]
      %v227 = vld [vmem:[%s193 + $0x64] sm:$0xf]
      %v228 = vld [vmem:[%s193 + $0x68] sm:$0xf]
      %v229 = vld [vmem:[%s193 + $0x6c] sm:$0xf]
      %v230 = vld [vmem:[%s193 + $0x70] sm:$0xf]
      %v231 = vld [vmem:[%s193 + $0x74] sm:$0xf]
      %v232 = vld [vmem:[%s193 + $0x78] sm:$0xf]
      %v233 = vld [vmem:[%s193 + $0x7c] sm:$0xf]
      %v234 = vld [vmem:[%s193 + $0x80] sm:$0xf]
      %v235 = vld [vmem:[%s193 + $0x84] sm:$0xf]
      %v236 = vld [vmem:[%s193 + $0x88] sm:$0xf]
      %v237 = vld [vmem:[%s193 + $0x8c] sm:$0xf]
      %v238 = vld [vmem:[%s193 + $0x90] sm:$0xf]
      %v239 = vld [vmem:[%s193 + $0x94] sm:$0xf]
      %v240 = vld [vmem:[%s193 + $0x98] sm:$0xf]
      %v241 = vld [vmem:[%s193 + $0x9c] sm:$0xf]
      %v242 = vld [vmem:[%s193 + $0xa0] sm:$0xf]
      %v243 = vld [vmem:[%s193 + $0xa4] sm:$0xf]
      %v244 = vld [vmem:[%s193 + $0xa8] sm:$0xf]
      %v245 = vld [vmem:[%s193 + $0xac] sm:$0xf]
      %v246 = vld [vmem:[%s193 + $0xb0] sm:$0xf]
      %v247 = vld [vmem:[%s193 + $0xb4] sm:$0xf]
      %v248 = vld [vmem:[%s193 + $0xb8] sm:$0xf]
      %v249 = vld [vmem:[%s193 + $0xbc] sm:$0xf]
      %v250 = vld [vmem:[%s193 + $0xc0] sm:$0xf]
      %v251 = vld [vmem:[%s193 + $0xc4] sm:$0xf]
      %v252 = vld [vmem:[%s193 + $0xc8] sm:$0xf]
      %v253 = vld [vmem:[%s193 + $0xcc] sm:$0xf]
      %v254 = vld [vmem:[%s193 + $0xd0] sm:$0xf]
      %v255 = vld [vmem:[%s193 + $0xd4] sm:$0xf]
      %v256 = vld [vmem:[%s193 + $0xd8] sm:$0xf]
      %v257 = vld [vmem:[%s193 + $0xdc] sm:$0xf]
      %v258 = vld [vmem:[%s193 + $0xe0] sm:$0xf]
      %v259 = vld [vmem:[%s193 + $0xe4] sm:$0xf]
      %v260 = vld [vmem:[%s193 + $0xe8] sm:$0xf]
      %v261 = vld [vmem:[%s193 + $0xec] sm:$0xf]
      %v262 = vld [vmem:[%s193 + $0xf0] sm:$0xf]
      %v263 = vld [vmem:[%s193 + $0xf4] sm:$0xf]
      %v264 = vld [vmem:[%s193 + $0xf8] sm:$0xf]
      %v265 = vld [vmem:[%s193 + $0xfc] sm:$0xf]
      %v266 = vld [vmem:[%s193 + $0x100] sm:$0xf]
      %v267 = vld [vmem:[%s193 + $0x104] sm:$0xf]
      %v268 = vld [vmem:[%s193 + $0x108] sm:$0xf]
      %v269 = vld [vmem:[%s193 + $0x10c] sm:$0xf]
      %v270 = vld [vmem:[%s193 + $0x110] sm:$0xf]
      %v271 = vld [vmem:[%s193 + $0x114] sm:$0xf]
      %v272 = vld [vmem:[%s193 + $0x118] sm:$0xf]
      %v273 = vld [vmem:[%s193 + $0x11c] sm:$0xf]
      %v274 = vld [vmem:[%s193 + $0x120] sm:$0xf]
      %v275 = vld [vmem:[%s193 + $0x124] sm:$0xf]
      %v276 = vld [vmem:[%s193 + $0x128] sm:$0xf]
      %v277 = vld [vmem:[%s193 + $0x12c] sm:$0xf]
      %v278 = vld [vmem:[%s193 + $0x130] sm:$0xf]
      %v279 = vld [vmem:[%s193 + $0x134] sm:$0xf]
      %v280 = vld [vmem:[%s193 + $0x138] sm:$0xf]
      %v281 = vld [vmem:[%s193 + $0x13c] sm:$0xf]
      %v282 = vld [vmem:[%s193 + $0x140] sm:$0xf]
      %v283 = vld [vmem:[%s193 + $0x144] sm:$0xf]
      %v284 = vld [vmem:[%s193 + $0x148] sm:$0xf]
      %v285 = vld [vmem:[%s193 + $0x14c] sm:$0xf]
      %v286 = vld [vmem:[%s193 + $0x150] sm:$0xf]
      %v287 = vld [vmem:[%s193 + $0x154] sm:$0xf]
      %v288 = vld [vmem:[%s193 + $0x158] sm:$0xf]
      %v289 = vld [vmem:[%s193 + $0x15c] sm:$0xf]
      %v290 = vld [vmem:[%s193 + $0x160] sm:$0xf]
      %v291 = vld [vmem:[%s193 + $0x164] sm:$0xf]
      %v292 = vld [vmem:[%s193 + $0x168] sm:$0xf]
      %v293 = vld [vmem:[%s193 + $0x16c] sm:$0xf]
      %v294 = vld [vmem:[%s193 + $0x170] sm:$0xf]
      %v295 = vld [vmem:[%s193 + $0x174] sm:$0xf]
      %v296 = vld [vmem:[%s193 + $0x178] sm:$0xf]
      %v297 = vld [vmem:[%s193 + $0x17c] sm:$0xf]
      %v298 = vld [vmem:[%s193 + $0x180] sm:$0xf]
      %v299 = vld [vmem:[%s193 + $0x184] sm:$0xf]
      %v300 = vld [vmem:[%s193 + $0x188] sm:$0xf]
      %v301 = vld [vmem:[%s193 + $0x18c] sm:$0xf]
      %v302 = vld [vmem:[%s193 + $0x190] sm:$0xf]
      %v303 = vld [vmem:[%s193 + $0x194] sm:$0xf]
      %v304 = vld [vmem:[%s193 + $0x198] sm:$0xf]
      %v305 = vld [vmem:[%s193 + $0x19c] sm:$0xf]
      %v306 = vld [vmem:[%s193 + $0x1a0] sm:$0xf]
      %v307 = vld [vmem:[%s193 + $0x1a4] sm:$0xf]
      %v308 = vld [vmem:[%s193 + $0x1a8] sm:$0xf]
      %v309 = vld [vmem:[%s193 + $0x1ac] sm:$0xf]
      %v310 = vld [vmem:[%s193 + $0x1b0] sm:$0xf]
      %v311 = vld [vmem:[%s193 + $0x1b4] sm:$0xf]
      %v312 = vld [vmem:[%s193 + $0x1b8] sm:$0xf]
      %v313 = vld [vmem:[%s193 + $0x1bc] sm:$0xf]
      %v314 = vld [vmem:[%s193 + $0x1c0] sm:$0xf]
      %v315 = vld [vmem:[%s193 + $0x1c4] sm:$0xf]
      %v316 = vld [vmem:[%s193 + $0x1c8] sm:$0xf]
      %v317 = vld [vmem:[%s193 + $0x1cc] sm:$0xf]
      %v318 = vld [vmem:[%s193 + $0x1d0] sm:$0xf]
      %v319 = vld [vmem:[%s1] sm:$0xf]
      %v320 = vld [vmem:[%s1 + $0x4] sm:$0xf]
      %v438 = vunpack.c.l.b16 %v202
      %v439 = vunpack.c.l.b16 %v203
      %v440 = vunpack.c.l.b16 %v204
      %v441 = vunpack.c.l.b16 %v205
      %v442 = vunpack.c.l.b16 %v206
      %v443 = vunpack.c.l.b16 %v207
      %v444 = vunpack.c.l.b16 %v208
      %v445 = vunpack.c.l.b16 %v209
      %v446 = vunpack.c.l.b16 %v210
      %v447 = vunpack.c.l.b16 %v211
      %v448 = vunpack.c.l.b16 %v212
      %v449 = vunpack.c.l.b16 %v213
      %v450 = vunpack.c.l.b16 %v214
      %v451 = vunpack.c.l.b16 %v215
      %v452 = vunpack.c.l.b16 %v216
      %v453 = vunpack.c.l.b16 %v217
      %v454 = vunpack.c.l.b16 %v218
      %v455 = vunpack.c.l.b16 %v219
      %v456 = vunpack.c.l.b16 %v220
      %v457 = vunpack.c.l.b16 %v221
      %v458 = vunpack.c.l.b16 %v222
      %v459 = vunpack.c.l.b16 %v223
      %v460 = vunpack.c.l.b16 %v224
      %v461 = vunpack.c.l.b16 %v225
      %v462 = vunpack.c.l.b16 %v226
      %v463 = vunpack.c.l.b16 %v227
      %v464 = vunpack.c.l.b16 %v228
      %v465 = vunpack.c.l.b16 %v229
      %v466 = vunpack.c.l.b16 %v230
      %v467 = vunpack.c.l.b16 %v231
      %v468 = vunpack.c.l.b16 %v232
      %v469 = vunpack.c.l.b16 %v233
      %v470 = vunpack.c.l.b16 %v234
      %v471 = vunpack.c.l.b16 %v235
      %v472 = vunpack.c.l.b16 %v236
      %v473 = vunpack.c.l.b16 %v237
      %v474 = vunpack.c.l.b16 %v238
      %v475 = vunpack.c.l.b16 %v239
      %v476 = vunpack.c.l.b16 %v240
      %v477 = vunpack.c.l.b16 %v241
      %v478 = vunpack.c.l.b16 %v242
      %v479 = vunpack.c.l.b16 %v243
      %v480 = vunpack.c.l.b16 %v244
      %v481 = vunpack.c.l.b16 %v245
      %v482 = vunpack.c.l.b16 %v246
      %v483 = vunpack.c.l.b16 %v247
      %v484 = vunpack.c.l.b16 %v248
      %v485 = vunpack.c.l.b16 %v249
      %v486 = vunpack.c.l.b16 %v250
      %v487 = vunpack.c.l.b16 %v251
      %v488 = vunpack.c.l.b16 %v252
      %v489 = vunpack.c.l.b16 %v253
      %v490 = vunpack.c.l.b16 %v254
      %v491 = vunpack.c.l.b16 %v255
      %v492 = vunpack.c.l.b16 %v256
      %v493 = vunpack.c.l.b16 %v257
      %v494 = vunpack.c.l.b16 %v258
      %v495 = vunpack.c.l.b16 %v259
      %v496 = vunpack.c.l.b16 %v260
      %v497 = vunpack.c.l.b16 %v261
      %v498 = vunpack.c.l.b16 %v262
      %v499 = vunpack.c.l.b16 %v263
      %v500 = vunpack.c.l.b16 %v264
      %v501 = vunpack.c.l.b16 %v265
      %v502 = vunpack.c.l.b16 %v266
      %v503 = vunpack.c.l.b16 %v267
      %v504 = vunpack.c.l.b16 %v268
      %v505 = vunpack.c.l.b16 %v269
      %v506 = vunpack.c.l.b16 %v270
      %v507 = vunpack.c.l.b16 %v271
      %v508 = vunpack.c.l.b16 %v272
      %v509 = vunpack.c.l.b16 %v273
      %v510 = vunpack.c.l.b16 %v274
      %v511 = vunpack.c.l.b16 %v275
      %v512 = vunpack.c.l.b16 %v276
      %v513 = vunpack.c.l.b16 %v277
      %v514 = vunpack.c.l.b16 %v278
      %v515 = vunpack.c.l.b16 %v279
      %v516 = vunpack.c.l.b16 %v280
      %v517 = vunpack.c.l.b16 %v281
      %v518 = vunpack.c.l.b16 %v282
      %v519 = vunpack.c.l.b16 %v283
      %v520 = vunpack.c.l.b16 %v284
      %v521 = vunpack.c.l.b16 %v285
      %v522 = vunpack.c.l.b16 %v286
      %v523 = vunpack.c.l.b16 %v287
      %v524 = vunpack.c.l.b16 %v288
      %v525 = vunpack.c.l.b16 %v289
      %v526 = vunpack.c.l.b16 %v290
      %v527 = vunpack.c.l.b16 %v291
      %v528 = vunpack.c.l.b16 %v292
      %v529 = vunpack.c.l.b16 %v293
      %v530 = vunpack.c.l.b16 %v294
      %v531 = vunpack.c.l.b16 %v295
      %v532 = vunpack.c.l.b16 %v296
      %v533 = vunpack.c.l.b16 %v297
      %v534 = vunpack.c.l.b16 %v298
      %v535 = vunpack.c.l.b16 %v299
      %v536 = vunpack.c.l.b16 %v300
      %v537 = vunpack.c.l.b16 %v301
      %v538 = vunpack.c.l.b16 %v302
      %v539 = vunpack.c.l.b16 %v303
      %v540 = vunpack.c.l.b16 %v304
      %v541 = vunpack.c.l.b16 %v305
      %v542 = vunpack.c.l.b16 %v306
      %v543 = vunpack.c.l.b16 %v307
      %v544 = vunpack.c.l.b16 %v308
      %v545 = vunpack.c.l.b16 %v309
      %v546 = vunpack.c.l.b16 %v310
      %v547 = vunpack.c.l.b16 %v311
      %v548 = vunpack.c.l.b16 %v312
      %v549 = vunpack.c.l.b16 %v313
      %v550 = vunpack.c.l.b16 %v314
      %v551 = vunpack.c.l.b16 %v315
      %v552 = vunpack.c.l.b16 %v316
      %v553 = vunpack.c.l.b16 %v317
      %v554 = vunpack.c.l.b16 %v318
      %v555 = vpack.c.b16 %v439, %v438
      %v556 = vpack.c.b16 %v441, %v440
      %v557 = vpack.c.b16 %v443, %v442
      %v558 = vpack.c.b16 %v445, %v444
      %v559 = vpack.c.b16 %v447, %v446
      %v560 = vpack.c.b16 %v449, %v448
      %v561 = vpack.c.b16 %v451, %v450
      %v562 = vpack.c.b16 %v453, %v452
      %v563 = vpack.c.b16 %v455, %v454
      %v564 = vpack.c.b16 %v457, %v456
      %v565 = vpack.c.b16 %v459, %v458
      %v566 = vpack.c.b16 %v461, %v460
      %v567 = vpack.c.b16 %v463, %v462
      %v568 = vpack.c.b16 %v465, %v464
      %v569 = vpack.c.b16 %v467, %v466
      %v570 = vpack.c.b16 %v469, %v468
      %v571 = vpack.c.b16 %v471, %v470
      %v572 = vpack.c.b16 %v473, %v472
      %v573 = vpack.c.b16 %v475, %v474
      %v574 = vpack.c.b16 %v477, %v476
      %v575 = vpack.c.b16 %v479, %v478
      %v576 = vpack.c.b16 %v481, %v480
      %v577 = vpack.c.b16 %v483, %v482
      %v578 = vpack.c.b16 %v485, %v484
      %v579 = vpack.c.b16 %v487, %v486
      %v580 = vpack.c.b16 %v489, %v488
      %v581 = vpack.c.b16 %v491, %v490
      %v582 = vpack.c.b16 %v493, %v492
      %v583 = vpack.c.b16 %v495, %v494
      %v584 = vpack.c.b16 %v497, %v496
      %v585 = vpack.c.b16 %v499, %v498
      %v586 = vpack.c.b16 %v501, %v500
      %v587 = vpack.c.b16 %v503, %v502
      %v588 = vpack.c.b16 %v505, %v504
      %v589 = vpack.c.b16 %v507, %v506
      %v590 = vpack.c.b16 %v509, %v508
      %v591 = vpack.c.b16 %v511, %v510
      %v592 = vpack.c.b16 %v513, %v512
      %v593 = vpack.c.b16 %v515, %v514
      %v594 = vpack.c.b16 %v517, %v516
      %v595 = vpack.c.b16 %v519, %v518
      %v596 = vpack.c.b16 %v521, %v520
      %v597 = vpack.c.b16 %v523, %v522
      %v598 = vpack.c.b16 %v525, %v524
      %v599 = vpack.c.b16 %v527, %v526
      %v600 = vpack.c.b16 %v529, %v528
      %v601 = vpack.c.b16 %v531, %v530
      %v602 = vpack.c.b16 %v533, %v532
      %v603 = vpack.c.b16 %v535, %v534
      %v604 = vpack.c.b16 %v537, %v536
      %v605 = vpack.c.b16 %v539, %v538
      %v606 = vpack.c.b16 %v541, %v540
      %v607 = vpack.c.b16 %v543, %v542
      %v608 = vpack.c.b16 %v545, %v544
      %v609 = vpack.c.b16 %v547, %v546
      %v610 = vpack.c.b16 %v549, %v548
      %v611 = vpack.c.b16 %v551, %v550
      %v612 = vpack.c.b16 %v553, %v552
      %v613 = vpack.c.b16 %v554, %v554
      %v616 = vunpack.c.l.b16 %v319
      %v617 = vunpack.c.l.b16 %v320
      %v618 = vpack.c.b16 %v617, %v616
      %vm620 = vcmask 130048
      %v622 = vsel %vm620, %v555, 0
      %v625 = vsel %vm620, %v556, 0
      %v628 = vsel %vm620, %v557, 0
      %v631 = vsel %vm620, %v558, 0
      %v634 = vsel %vm620, %v559, 0
      %v637 = vsel %vm620, %v560, 0
      %v640 = vsel %vm620, %v561, 0
      %v643 = vsel %vm620, %v562, 0
      %v646 = vsel %vm620, %v563, 0
      %v649 = vsel %vm620, %v564, 0
      %v652 = vsel %vm620, %v565, 0
      %v655 = vsel %vm620, %v566, 0
      %v658 = vsel %vm620, %v567, 0
      %v661 = vsel %vm620, %v568, 0
      %v664 = vsel %vm620, %v569, 0
      %v667 = vsel %vm620, %v570, 0
      %v670 = vsel %vm620, %v571, 0
      %v673 = vsel %vm620, %v572, 0
      %v676 = vsel %vm620, %v573, 0
      %v679 = vsel %vm620, %v574, 0
      %v682 = vsel %vm620, %v575, 0
      %v685 = vsel %vm620, %v576, 0
      %v688 = vsel %vm620, %v577, 0
      %v691 = vsel %vm620, %v578, 0
      %v694 = vsel %vm620, %v579, 0
      %v697 = vsel %vm620, %v580, 0
      %v700 = vsel %vm620, %v581, 0
      %v703 = vsel %vm620, %v582, 0
      %v706 = vsel %vm620, %v583, 0
      %v709 = vsel %vm620, %v584, 0
      %v712 = vsel %vm620, %v585, 0
      %v715 = vsel %vm620, %v586, 0
      %v718 = vsel %vm620, %v587, 0
      %v721 = vsel %vm620, %v588, 0
      %v724 = vsel %vm620, %v589, 0
      %v727 = vsel %vm620, %v590, 0
      %v730 = vsel %vm620, %v591, 0
      %v733 = vsel %vm620, %v592, 0
      %v736 = vsel %vm620, %v593, 0
      %v739 = vsel %vm620, %v594, 0
      %v742 = vsel %vm620, %v595, 0
      %v745 = vsel %vm620, %v596, 0
      %v748 = vsel %vm620, %v597, 0
      %v751 = vsel %vm620, %v598, 0
      %v754 = vsel %vm620, %v599, 0
      %v757 = vsel %vm620, %v600, 0
      %v760 = vsel %vm620, %v601, 0
      %v763 = vsel %vm620, %v602, 0
      %v766 = vsel %vm620, %v603, 0
      %v769 = vsel %vm620, %v604, 0
      %v772 = vsel %vm620, %v605, 0
      %v775 = vsel %vm620, %v606, 0
      %v778 = vsel %vm620, %v607, 0
      %v781 = vsel %vm620, %v608, 0
      %v784 = vsel %vm620, %v609, 0
      %v787 = vsel %vm620, %v610, 0
      %v790 = vsel %vm620, %v611, 0
      %v793 = vsel %vm620, %v612, 0
      %v796 = vsel %vm620, %v613, 0
      %798 = vmatprep.subr.bf16.mxu0 0
      %799 = vmatpush1.bf16.msra.mxu0 %v618
      %800 = vmatprep.subr.bf16.mxu0 0
      %801 = vmatpush1.bf16.msra.mxu0 0
      %802 = vmatprep.subr.bf16.mxu0 0
      %803 = vmatpush1.bf16.msra.mxu0 0
      %804 = vmatprep.subr.bf16.mxu0 0
      %805 = vmatpush1.bf16.msra.mxu0 0
      %806 = vmatprep.subr.bf16.mxu0 0
      %807 = vmatpush1.bf16.msra.mxu0 0
      %808 = vmatprep.subr.bf16.mxu0 0
      %809 = vmatpush1.bf16.msra.mxu0 0
      %810 = vmatprep.subr.bf16.mxu0 0
      %811 = vmatpush1.bf16.msra.mxu0 0
      %812 = vmatprep.subr.bf16.mxu0 0
      %813 = vmatpush1.bf16.msra.mxu0 0
      %814 = vmatprep.subr.bf16.mxu0 0
      %815 = vmatpush1.bf16.msra.mxu0 0
      %816 = vmatprep.subr.bf16.mxu0 0
      %817 = vmatpush1.bf16.msra.mxu0 0
      %818 = vmatprep.subr.bf16.mxu0 0
      %819 = vmatpush1.bf16.msra.mxu0 0
      %820 = vmatprep.subr.bf16.mxu0 0
      %821 = vmatpush1.bf16.msra.mxu0 0
      %822 = vmatprep.subr.bf16.mxu0 0
      %823 = vmatpush1.bf16.msra.mxu0 0
      %824 = vmatprep.subr.bf16.mxu0 0
      %825 = vmatpush1.bf16.msra.mxu0 0
      %826 = vmatprep.subr.bf16.mxu0 0
      %827 = vmatpush1.bf16.msra.mxu0 0
      %828 = vmatprep.subr.bf16.mxu0 0
      %829 = vmatpush1.bf16.msra.mxu0 0
      %830 = vmatprep.mubr.bf16.mxu0 0
      %831 = vmatmul.mubr.bf16.gmra.mrb[0].mxu0 %v622
      %v832 = vpop.f32.mrb[0].mxu0
      %v833 = vadd.f32 0.0, %v832
      %v834 = vpop.f32.mrb[0].mxu0
      %v835 = vpop.f32.mrb[0].mxu0
      %v836 = vadd.f32 0.0, %v835
      %v837 = vpop.f32.mrb[0].mxu0
      %838 = vmatprep.mubr.bf16.mxu0 0
      %839 = vmatmul.mubr.bf16.gmra.mrb[0].mxu0 %v625
      %v840 = vpop.f32.mrb[0].mxu0
      %v841 = vadd.f32 0.0, %v840
      %v842 = vpop.f32.mrb[0].mxu0
      %v843 = vpop.f32.mrb[0].mxu0
      %v844 = vadd.f32 0.0, %v843
      %v845 = vpop.f32.mrb[0].mxu0
      %846 = vmatprep.mubr.bf16.mxu0 0
      %847 = vmatmul.mubr.bf16.gmra.mrb[0].mxu0 %v628
      %v848 = vpop.f32.mrb[0].mxu0
      %v849 = vadd.f32 0.0, %v848
      %v850 = vpop.f32.mrb[0].mxu0
      %v851 = vpop.f32.mrb[0].mxu0
      %v852 = vadd.f32 0.0, %v851
      %v853 = vpop.f32.mrb[0].mxu0
      %854 = vmatprep.mubr.bf16.mxu0 0
      %855 = vmatmul.mubr.bf16.gmra.mrb[0].mxu0 %v631
      %v856 = vpop.f32.mrb[0].mxu0
      %v857 = vadd.f32 0.0, %v856
      %v858 = vpop.f32.mrb[0].mxu0
      %v859 = vpop.f32.mrb[0].mxu0
      %v860 = vadd.f32 0.0, %v859
      %v861 = vpop.f32.mrb[0].mxu0
      %862 = vmatprep.mubr.bf16.mxu0 0
      %863 = vmatmul.mubr.bf16.gmra.mrb[0].mxu0 %v634
      %v864 = vpop.f32.mrb[0].mxu0
      %v865 = vadd.f32 0.0, %v864
      %v866 = vpop.f32.mrb[0].mxu0
      %v867 = vpop.f32.mrb[0].mxu0
      %v868 = vadd.f32 0.0, %v867
      %v869 = vpop.f32.mrb[0].mxu0
      %870 = vmatprep.mubr.bf16.mxu0 0
      %871 = vmatmul.mubr.bf16.gmra.mrb[0].mxu0 %v637
      %v872 = vpop.f32.mrb[0].mxu0
      %v873 = vadd.f32 0.0, %v872
      %v874 = vpop.f32.mrb[0].mxu0
      %v875 = vpop.f32.mrb[0].mxu0
      %v876 = vadd.f32 0.0, %v875
      %v877 = vpop.f32.mrb[0].mxu0
      %878 = vmatprep.mubr.bf16.mxu0 0
      %879 = vmatmul.mubr.bf16.gmra.mrb[0].mxu0 %v640
      %v880 = vpop.f32.mrb[0].mxu0
      %v881 = vadd.f32 0.0, %v880
      %v882 = vpop.f32.mrb[0].mxu0
      %v883 = vpop.f32.mrb[0].mxu0
      %v884 = vadd.f32 0.0, %v883
      %v885 = vpop.f32.mrb[0].mxu0
      %886 = vmatprep.mubr.bf16.mxu0 0
      %887 = vmatmul.mubr.bf16.gmra.mrb[0].mxu0 %v643
      %v888 = vpop.f32.mrb[0].mxu0
      %v889 = vadd.f32 0.0, %v888
      %v890 = vpop.f32.mrb[0].mxu0
      %v891 = vpop.f32.mrb[0].mxu0
      %v892 = vadd.f32 0.0, %v891
      %v893 = vpop.f32.mrb[0].mxu0
      %894 = vmatprep.mubr.bf16.mxu0 0
      %895 = vmatmul.mubr.bf16.gmra.mrb[0].mxu0 %v646
      %v896 = vpop.f32.mrb[0].mxu0
      %v897 = vadd.f32 0.0, %v896
      %v898 = vpop.f32.mrb[0].mxu0
      %v899 = vpop.f32.mrb[0].mxu0
      %v900 = vadd.f32 0.0, %v899
      %v901 = vpop.f32.mrb[0].mxu0
      %902 = vmatprep.mubr.bf16.mxu0 0
      %903 = vmatmul.mubr.bf16.gmra.mrb[0].mxu0 %v649
      %v904 = vpop.f32.mrb[0].mxu0
      %v905 = vadd.f32 0.0, %v904
      %v906 = vpop.f32.mrb[0].mxu0
      %v907 = vpop.f32.mrb[0].mxu0
      %v908 = vadd.f32 0.0, %v907
      %v909 = vpop.f32.mrb[0].mxu0
      %910 = vmatprep.mubr.bf16.mxu0 0
      %911 = vmatmul.mubr.bf16.gmra.mrb[0].mxu0 %v652
      %v912 = vpop.f32.mrb[0].mxu0
      %v913 = vadd.f32 0.0, %v912
      %v914 = vpop.f32.mrb[0].mxu0
      %v915 = vpop.f32.mrb[0].mxu0
      %v916 = vadd.f32 0.0, %v915
      %v917 = vpop.f32.mrb[0].mxu0
      %918 = vmatprep.mubr.bf16.mxu0 0
      %919 = vmatmul.mubr.bf16.gmra.mrb[0].mxu0 %v655
      %v920 = vpop.f32.mrb[0].mxu0
      %v921 = vadd.f32 0.0, %v920
      %v922 = vpop.f32.mrb[0].mxu0
      %v923 = vpop.f32.mrb[0].mxu0
      %v924 = vadd.f32 0.0, %v923
      %v925 = vpop.f32.mrb[0].mxu0
      %926 = vmatprep.mubr.bf16.mxu0 0
      %927 = vmatmul.mubr.bf16.gmra.mrb[0].mxu0 %v658
      %v928 = vpop.f32.mrb[0].mxu0
      %v929 = vadd.f32 0.0, %v928
      %v930 = vpop.f32.mrb[0].mxu0
      %v931 = vpop.f32.mrb[0].mxu0
      %v932 = vadd.f32 0.0, %v931
      %v933 = vpop.f32.mrb[0].mxu0
      %934 = vmatprep.mubr.bf16.mxu0 0
      %935 = vmatmul.mubr.bf16.gmra.mrb[0].mxu0 %v661
      %v936 = vpop.f32.mrb[0].mxu0
      %v937 = vadd.f32 0.0, %v936
      %v938 = vpop.f32.mrb[0].mxu0
      %v939 = vpop.f32.mrb[0].mxu0
      %v940 = vadd.f32 0.0, %v939
      %v941 = vpop.f32.mrb[0].mxu0
      %942 = vmatprep.mubr.bf16.mxu0 0
      %943 = vmatmul.mubr.bf16.gmra.mrb[0].mxu0 %v664
      %v944 = vpop.f32.mrb[0].mxu0
      %v945 = vadd.f32 0.0, %v944
      %v946 = vpop.f32.mrb[0].mxu0
      %v947 = vpop.f32.mrb[0].mxu0
      %v948 = vadd.f32 0.0, %v947
      %v949 = vpop.f32.mrb[0].mxu0
      %950 = vmatprep.mubr.bf16.mxu0 0
      %951 = vmatmul.mubr.bf16.gmra.mrb[0].mxu0 %v667
      %v952 = vpop.f32.mrb[0].mxu0
      %v953 = vadd.f32 0.0, %v952
      %v954 = vpop.f32.mrb[0].mxu0
      %v955 = vpop.f32.mrb[0].mxu0
      %v956 = vadd.f32 0.0, %v955
      %v957 = vpop.f32.mrb[0].mxu0
      %958 = vmatprep.mubr.bf16.mxu0 0
      %959 = vmatmul.mubr.bf16.gmra.mrb[0].mxu0 %v670
      %v960 = vpop.f32.mrb[0].mxu0
      %v961 = vadd.f32 0.0, %v960
      %v962 = vpop.f32.mrb[0].mxu0
      %v963 = vpop.f32.mrb[0].mxu0
      %v964 = vadd.f32 0.0, %v963
      %v965 = vpop.f32.mrb[0].mxu0
      %966 = vmatprep.mubr.bf16.mxu0 0
      %967 = vmatmul.mubr.bf16.gmra.mrb[0].mxu0 %v673
      %v968 = vpop.f32.mrb[0].mxu0
      %v969 = vadd.f32 0.0, %v968
      %v970 = vpop.f32.mrb[0].mxu0
      %v971 = vpop.f32.mrb[0].mxu0
      %v972 = vadd.f32 0.0, %v971
      %v973 = vpop.f32.mrb[0].mxu0
      %974 = vmatprep.mubr.bf16.mxu0 0
      %975 = vmatmul.mubr.bf16.gmra.mrb[0].mxu0 %v676
      %v976 = vpop.f32.mrb[0].mxu0
      %v977 = vadd.f32 0.0, %v976
      %v978 = vpop.f32.mrb[0].mxu0
      %v979 = vpop.f32.mrb[0].mxu0
      %v980 = vadd.f32 0.0, %v979
      %v981 = vpop.f32.mrb[0].mxu0
      %982 = vmatprep.mubr.bf16.mxu0 0
      %983 = vmatmul.mubr.bf16.gmra.mrb[0].mxu0 %v679
      %v984 = vpop.f32.mrb[0].mxu0
      %v985 = vadd.f32 0.0, %v984
      %v986 = vpop.f32.mrb[0].mxu0
      %v987 = vpop.f32.mrb[0].mxu0
      %v988 = vadd.f32 0.0, %v987
      %v989 = vpop.f32.mrb[0].mxu0
      %990 = vmatprep.mubr.bf16.mxu0 0
      %991 = vmatmul.mubr.bf16.gmra.mrb[0].mxu0 %v682
      %v992 = vpop.f32.mrb[0].mxu0
      %v993 = vadd.f32 0.0, %v992
      %v994 = vpop.f32.mrb[0].mxu0
      %v995 = vpop.f32.mrb[0].mxu0
      %v996 = vadd.f32 0.0, %v995
      %v997 = vpop.f32.mrb[0].mxu0
      %998 = vmatprep.mubr.bf16.mxu0 0
      %999 = vmatmul.mubr.bf16.gmra.mrb[0].mxu0 %v685
      %v1000 = vpop.f32.mrb[0].mxu0
      %v1001 = vadd.f32 0.0, %v1000
      %v1002 = vpop.f32.mrb[0].mxu0
      %v1003 = vpop.f32.mrb[0].mxu0
      %v1004 = vadd.f32 0.0, %v1003
      %v1005 = vpop.f32.mrb[0].mxu0
      %1006 = vmatprep.mubr.bf16.mxu0 0
      %1007 = vmatmul.mubr.bf16.gmra.mrb[0].mxu0 %v688
      %v1008 = vpop.f32.mrb[0].mxu0
      %v1009 = vadd.f32 0.0, %v1008
      %v1010 = vpop.f32.mrb[0].mxu0
      %v1011 = vpop.f32.mrb[0].mxu0
      %v1012 = vadd.f32 0.0, %v1011
      %v1013 = vpop.f32.mrb[0].mxu0
      %1014 = vmatprep.mubr.bf16.mxu0 0
      %1015 = vmatmul.mubr.bf16.gmra.mrb[0].mxu0 %v691
      %v1016 = vpop.f32.mrb[0].mxu0
      %v1017 = vadd.f32 0.0, %v1016
      %v1018 = vpop.f32.mrb[0].mxu0
      %v1019 = vpop.f32.mrb[0].mxu0
      %v1020 = vadd.f32 0.0, %v1019
      %v1021 = vpop.f32.mrb[0].mxu0
      %1022 = vmatprep.mubr.bf16.mxu0 0
      %1023 = vmatmul.mubr.bf16.gmra.mrb[0].mxu0 %v694
      %v1024 = vpop.f32.mrb[0].mxu0
      %v1025 = vadd.f32 0.0, %v1024
      %v1026 = vpop.f32.mrb[0].mxu0
      %v1027 = vpop.f32.mrb[0].mxu0
      %v1028 = vadd.f32 0.0, %v1027
      %v1029 = vpop.f32.mrb[0].mxu0
      %1030 = vmatprep.mubr.bf16.mxu0 0
      %1031 = vmatmul.mubr.bf16.gmra.mrb[0].mxu0 %v697
      %v1032 = vpop.f32.mrb[0].mxu0
      %v1033 = vadd.f32 0.0, %v1032
      %v1034 = vpop.f32.mrb[0].mxu0
      %v1035 = vpop.f32.mrb[0].mxu0
      %v1036 = vadd.f32 0.0, %v1035
      %v1037 = vpop.f32.mrb[0].mxu0
      %1038 = vmatprep.mubr.bf16.mxu0 0
      %1039 = vmatmul.mubr.bf16.gmra.mrb[0].mxu0 %v700
      %v1040 = vpop.f32.mrb[0].mxu0
      %v1041 = vadd.f32 0.0, %v1040
      %v1042 = vpop.f32.mrb[0].mxu0
      %v1043 = vpop.f32.mrb[0].mxu0
      %v1044 = vadd.f32 0.0, %v1043
      %v1045 = vpop.f32.mrb[0].mxu0
      %1046 = vmatprep.mubr.bf16.mxu0 0
      %1047 = vmatmul.mubr.bf16.gmra.mrb[0].mxu0 %v703
      %v1048 = vpop.f32.mrb[0].mxu0
      %v1049 = vadd.f32 0.0, %v1048
      %v1050 = vpop.f32.mrb[0].mxu0
      %v1051 = vpop.f32.mrb[0].mxu0
      %v1052 = vadd.f32 0.0, %v1051
      %v1053 = vpop.f32.mrb[0].mxu0
      %1054 = vmatprep.mubr.bf16.mxu0 0
      %1055 = vmatmul.mubr.bf16.gmra.mrb[0].mxu0 %v706
      %v1056 = vpop.f32.mrb[0].mxu0
      %v1057 = vadd.f32 0.0, %v1056
      %v1058 = vpop.f32.mrb[0].mxu0
      %v1059 = vpop.f32.mrb[0].mxu0
      %v1060 = vadd.f32 0.0, %v1059
      %v1061 = vpop.f32.mrb[0].mxu0
      %1062 = vmatprep.mubr.bf16.mxu0 0
      %1063 = vmatmul.mubr.bf16.gmra.mrb[0].mxu0 %v709
      %v1064 = vpop.f32.mrb[0].mxu0
      %v1065 = vadd.f32 0.0, %v1064
      %v1066 = vpop.f32.mrb[0].mxu0
      %v1067 = vpop.f32.mrb[0].mxu0
      %v1068 = vadd.f32 0.0, %v1067
      %v1069 = vpop.f32.mrb[0].mxu0
      %1070 = vmatprep.mubr.bf16.mxu0 0
      %1071 = vmatmul.mubr.bf16.gmra.mrb[0].mxu0 %v712
      %v1072 = vpop.f32.mrb[0].mxu0
      %v1073 = vadd.f32 0.0, %v1072
      %v1074 = vpop.f32.mrb[0].mxu0
      %v1075 = vpop.f32.mrb[0].mxu0
      %v1076 = vadd.f32 0.0, %v1075
      %v1077 = vpop.f32.mrb[0].mxu0
      %1078 = vmatprep.mubr.bf16.mxu0 0
      %1079 = vmatmul.mubr.bf16.gmra.mrb[0].mxu0 %v715
      %v1080 = vpop.f32.mrb[0].mxu0
      %v1081 = vadd.f32 0.0, %v1080
      %v1082 = vpop.f32.mrb[0].mxu0
      %v1083 = vpop.f32.mrb[0].mxu0
      %v1084 = vadd.f32 0.0, %v1083
      %v1085 = vpop.f32.mrb[0].mxu0
      %1086 = vmatprep.mubr.bf16.mxu0 0
      %1087 = vmatmul.mubr.bf16.gmra.mrb[0].mxu0 %v718
      %v1088 = vpop.f32.mrb[0].mxu0
      %v1089 = vadd.f32 0.0, %v1088
      %v1090 = vpop.f32.mrb[0].mxu0
      %v1091 = vpop.f32.mrb[0].mxu0
      %v1092 = vadd.f32 0.0, %v1091
      %v1093 = vpop.f32.mrb[0].mxu0
      %1094 = vmatprep.mubr.bf16.mxu0 0
      %1095 = vmatmul.mubr.bf16.gmra.mrb[0].mxu0 %v721
      %v1096 = vpop.f32.mrb[0].mxu0
      %v1097 = vadd.f32 0.0, %v1096
      %v1098 = vpop.f32.mrb[0].mxu0
      %v1099 = vpop.f32.mrb[0].mxu0
      %v1100 = vadd.f32 0.0, %v1099
      %v1101 = vpop.f32.mrb[0].mxu0
      %1102 = vmatprep.mubr.bf16.mxu0 0
      %1103 = vmatmul.mubr.bf16.gmra.mrb[0].mxu0 %v724
      %v1104 = vpop.f32.mrb[0].mxu0
      %v1105 = vadd.f32 0.0, %v1104
      %v1106 = vpop.f32.mrb[0].mxu0
      %v1107 = vpop.f32.mrb[0].mxu0
      %v1108 = vadd.f32 0.0, %v1107
      %v1109 = vpop.f32.mrb[0].mxu0
      %1110 = vmatprep.mubr.bf16.mxu0 0
      %1111 = vmatmul.mubr.bf16.gmra.mrb[0].mxu0 %v727
      %v1112 = vpop.f32.mrb[0].mxu0
      %v1113 = vadd.f32 0.0, %v1112
      %v1114 = vpop.f32.mrb[0].mxu0
      %v1115 = vpop.f32.mrb[0].mxu0
      %v1116 = vadd.f32 0.0, %v1115
      %v1117 = vpop.f32.mrb[0].mxu0
      %1118 = vmatprep.mubr.bf16.mxu0 0
      %1119 = vmatmul.mubr.bf16.gmra.mrb[0].mxu0 %v730
      %v1120 = vpop.f32.mrb[0].mxu0
      %v1121 = vadd.f32 0.0, %v1120
      %v1122 = vpop.f32.mrb[0].mxu0
      %v1123 = vpop.f32.mrb[0].mxu0
      %v1124 = vadd.f32 0.0, %v1123
      %v1125 = vpop.f32.mrb[0].mxu0
      %1126 = vmatprep.mubr.bf16.mxu0 0
      %1127 = vmatmul.mubr.bf16.gmra.mrb[0].mxu0 %v733
      %v1128 = vpop.f32.mrb[0].mxu0
      %v1129 = vadd.f32 0.0, %v1128
      %v1130 = vpop.f32.mrb[0].mxu0
      %v1131 = vpop.f32.mrb[0].mxu0
      %v1132 = vadd.f32 0.0, %v1131
      %v1133 = vpop.f32.mrb[0].mxu0
      %1134 = vmatprep.mubr.bf16.mxu0 0
      %1135 = vmatmul.mubr.bf16.gmra.mrb[0].mxu0 %v736
      %v1136 = vpop.f32.mrb[0].mxu0
      %v1137 = vadd.f32 0.0, %v1136
      %v1138 = vpop.f32.mrb[0].mxu0
      %v1139 = vpop.f32.mrb[0].mxu0
      %v1140 = vadd.f32 0.0, %v1139
      %v1141 = vpop.f32.mrb[0].mxu0
      %1142 = vmatprep.mubr.bf16.mxu0 0
      %1143 = vmatmul.mubr.bf16.gmra.mrb[0].mxu0 %v739
      %v1144 = vpop.f32.mrb[0].mxu0
      %v1145 = vadd.f32 0.0, %v1144
      %v1146 = vpop.f32.mrb[0].mxu0
      %v1147 = vpop.f32.mrb[0].mxu0
      %v1148 = vadd.f32 0.0, %v1147
      %v1149 = vpop.f32.mrb[0].mxu0
      %1150 = vmatprep.mubr.bf16.mxu0 0
      %1151 = vmatmul.mubr.bf16.gmra.mrb[0].mxu0 %v742
      %v1152 = vpop.f32.mrb[0].mxu0
      %v1153 = vadd.f32 0.0, %v1152
      %v1154 = vpop.f32.mrb[0].mxu0
      %v1155 = vpop.f32.mrb[0].mxu0
      %v1156 = vadd.f32 0.0, %v1155
      %v1157 = vpop.f32.mrb[0].mxu0
      %1158 = vmatprep.mubr.bf16.mxu0 0
      %1159 = vmatmul.mubr.bf16.gmra.mrb[0].mxu0 %v745
      %v1160 = vpop.f32.mrb[0].mxu0
      %v1161 = vadd.f32 0.0, %v1160
      %v1162 = vpop.f32.mrb[0].mxu0
      %v1163 = vpop.f32.mrb[0].mxu0
      %v1164 = vadd.f32 0.0, %v1163
      %v1165 = vpop.f32.mrb[0].mxu0
      %1166 = vmatprep.mubr.bf16.mxu0 0
      %1167 = vmatmul.mubr.bf16.gmra.mrb[0].mxu0 %v748
      %v1168 = vpop.f32.mrb[0].mxu0
      %v1169 = vadd.f32 0.0, %v1168
      %v1170 = vpop.f32.mrb[0].mxu0
      %v1171 = vpop.f32.mrb[0].mxu0
      %v1172 = vadd.f32 0.0, %v1171
      %v1173 = vpop.f32.mrb[0].mxu0
      %1174 = vmatprep.mubr.bf16.mxu0 0
      %1175 = vmatmul.mubr.bf16.gmra.mrb[0].mxu0 %v751
      %v1176 = vpop.f32.mrb[0].mxu0
      %v1177 = vadd.f32 0.0, %v1176
      %v1178 = vpop.f32.mrb[0].mxu0
      %v1179 = vpop.f32.mrb[0].mxu0
      %v1180 = vadd.f32 0.0, %v1179
      %v1181 = vpop.f32.mrb[0].mxu0
      %1182 = vmatprep.mubr.bf16.mxu0 0
      %1183 = vmatmul.mubr.bf16.gmra.mrb[0].mxu0 %v754
      %v1184 = vpop.f32.mrb[0].mxu0
      %v1185 = vadd.f32 0.0, %v1184
      %v1186 = vpop.f32.mrb[0].mxu0
      %v1187 = vpop.f32.mrb[0].mxu0
      %v1188 = vadd.f32 0.0, %v1187
      %v1189 = vpop.f32.mrb[0].mxu0
      %1190 = vmatprep.mubr.bf16.mxu0 0
      %1191 = vmatmul.mubr.bf16.gmra.mrb[0].mxu0 %v757
      %v1192 = vpop.f32.mrb[0].mxu0
      %v1193 = vadd.f32 0.0, %v1192
      %v1194 = vpop.f32.mrb[0].mxu0
      %v1195 = vpop.f32.mrb[0].mxu0
      %v1196 = vadd.f32 0.0, %v1195
      %v1197 = vpop.f32.mrb[0].mxu0
      %1198 = vmatprep.mubr.bf16.mxu0 0
      %1199 = vmatmul.mubr.bf16.gmra.mrb[0].mxu0 %v760
      %v1200 = vpop.f32.mrb[0].mxu0
      %v1201 = vadd.f32 0.0, %v1200
      %v1202 = vpop.f32.mrb[0].mxu0
      %v1203 = vpop.f32.mrb[0].mxu0
      %v1204 = vadd.f32 0.0, %v1203
      %v1205 = vpop.f32.mrb[0].mxu0
      %1206 = vmatprep.mubr.bf16.mxu0 0
      %1207 = vmatmul.mubr.bf16.gmra.mrb[0].mxu0 %v763
      %v1208 = vpop.f32.mrb[0].mxu0
      %v1209 = vadd.f32 0.0, %v1208
      %v1210 = vpop.f32.mrb[0].mxu0
      %v1211 = vpop.f32.mrb[0].mxu0
      %v1212 = vadd.f32 0.0, %v1211
      %v1213 = vpop.f32.mrb[0].mxu0
      %1214 = vmatprep.mubr.bf16.mxu0 0
      %1215 = vmatmul.mubr.bf16.gmra.mrb[0].mxu0 %v766
      %v1216 = vpop.f32.mrb[0].mxu0
      %v1217 = vadd.f32 0.0, %v1216
      %v1218 = vpop.f32.mrb[0].mxu0
      %v1219 = vpop.f32.mrb[0].mxu0
      %v1220 = vadd.f32 0.0, %v1219
      %v1221 = vpop.f32.mrb[0].mxu0
      %1222 = vmatprep.mubr.bf16.mxu0 0
      %1223 = vmatmul.mubr.bf16.gmra.mrb[0].mxu0 %v769
      %v1224 = vpop.f32.mrb[0].mxu0
      %v1225 = vadd.f32 0.0, %v1224
      %v1226 = vpop.f32.mrb[0].mxu0
      %v1227 = vpop.f32.mrb[0].mxu0
      %v1228 = vadd.f32 0.0, %v1227
      %v1229 = vpop.f32.mrb[0].mxu0
      %1230 = vmatprep.mubr.bf16.mxu0 0
      %1231 = vmatmul.mubr.bf16.gmra.mrb[0].mxu0 %v772
      %v1232 = vpop.f32.mrb[0].mxu0
      %v1233 = vadd.f32 0.0, %v1232
      %v1234 = vpop.f32.mrb[0].mxu0
      %v1235 = vpop.f32.mrb[0].mxu0
      %v1236 = vadd.f32 0.0, %v1235
      %v1237 = vpop.f32.mrb[0].mxu0
      %1238 = vmatprep.mubr.bf16.mxu0 0
      %1239 = vmatmul.mubr.bf16.gmra.mrb[0].mxu0 %v775
      %v1240 = vpop.f32.mrb[0].mxu0
      %v1241 = vadd.f32 0.0, %v1240
      %v1242 = vpop.f32.mrb[0].mxu0
      %v1243 = vpop.f32.mrb[0].mxu0
      %v1244 = vadd.f32 0.0, %v1243
      %v1245 = vpop.f32.mrb[0].mxu0
      %1246 = vmatprep.mubr.bf16.mxu0 0
      %1247 = vmatmul.mubr.bf16.gmra.mrb[0].mxu0 %v778
      %v1248 = vpop.f32.mrb[0].mxu0
      %v1249 = vadd.f32 0.0, %v1248
      %v1250 = vpop.f32.mrb[0].mxu0
      %v1251 = vpop.f32.mrb[0].mxu0
      %v1252 = vadd.f32 0.0, %v1251
      %v1253 = vpop.f32.mrb[0].mxu0
      %1254 = vmatprep.mubr.bf16.mxu0 0
      %1255 = vmatmul.mubr.bf16.gmra.mrb[0].mxu0 %v781
      %v1256 = vpop.f32.mrb[0].mxu0
      %v1257 = vadd.f32 0.0, %v1256
      %v1258 = vpop.f32.mrb[0].mxu0
      %v1259 = vpop.f32.mrb[0].mxu0
      %v1260 = vadd.f32 0.0, %v1259
      %v1261 = vpop.f32.mrb[0].mxu0
      %1262 = vmatprep.mubr.bf16.mxu0 0
      %1263 = vmatmul.mubr.bf16.gmra.mrb[0].mxu0 %v784
      %v1264 = vpop.f32.mrb[0].mxu0
      %v1265 = vadd.f32 0.0, %v1264
      %v1266 = vpop.f32.mrb[0].mxu0
      %v1267 = vpop.f32.mrb[0].mxu0
      %v1268 = vadd.f32 0.0, %v1267
      %v1269 = vpop.f32.mrb[0].mxu0
      %1270 = vmatprep.mubr.bf16.mxu0 0
      %1271 = vmatmul.mubr.bf16.gmra.mrb[0].mxu0 %v787
      %v1272 = vpop.f32.mrb[0].mxu0
      %v1273 = vadd.f32 0.0, %v1272
      %v1274 = vpop.f32.mrb[0].mxu0
      %v1275 = vpop.f32.mrb[0].mxu0
      %v1276 = vadd.f32 0.0, %v1275
      %v1277 = vpop.f32.mrb[0].mxu0
      %1278 = vmatprep.mubr.bf16.mxu0 0
      %1279 = vmatmul.mubr.bf16.gmra.mrb[0].mxu0 %v790
      %v1280 = vpop.f32.mrb[0].mxu0
      %v1281 = vadd.f32 0.0, %v1280
      %v1282 = vpop.f32.mrb[0].mxu0
      %v1283 = vpop.f32.mrb[0].mxu0
      %v1284 = vadd.f32 0.0, %v1283
      %v1285 = vpop.f32.mrb[0].mxu0
      %1286 = vmatprep.mubr.bf16.mxu0 0
      %1287 = vmatmul.mubr.bf16.gmra.mrb[0].mxu0 %v793
      %v1288 = vpop.f32.mrb[0].mxu0
      %v1289 = vadd.f32 0.0, %v1288
      %v1290 = vpop.f32.mrb[0].mxu0
      %v1291 = vpop.f32.mrb[0].mxu0
      %v1292 = vadd.f32 0.0, %v1291
      %v1293 = vpop.f32.mrb[0].mxu0
      %1294 = vmatprep.mubr.bf16.mxu0 0
      %1295 = vmatmul.mubr.bf16.gmra.mrb[0].mxu0 %v796
      %v1296 = vpop.f32.mrb[0].mxu0
      %v1297 = vadd.f32 0.0, %v1296
      %v1298 = vpop.f32.mrb[0].mxu0
      %v1299 = vpop.f32.mrb[0].mxu0
      %v1300 = vpop.f32.mrb[0].mxu0
      %1301 = vdwg.mxu0
      %v1302 = vld [vmem:[%s2] sm:$0x1]
      %v1304 = vlaneseq
      %v1305 = vshrl.u32 %v1304, 7
      %v1306 = vsub.s32 0, %v1305
      %v1307 = vrot.slane %v1302, %v1306
      %v1309 = vmul.f32 %v833, %v1307
      %v1310 = vmul.f32 %v836, %v1307
      %v1311 = vmul.f32 %v841, %v1307
      %v1312 = vmul.f32 %v844, %v1307
      %v1313 = vmul.f32 %v849, %v1307
      %v1314 = vmul.f32 %v852, %v1307
      %v1315 = vmul.f32 %v857, %v1307
      %v1316 = vmul.f32 %v860, %v1307
      %v1317 = vmul.f32 %v865, %v1307
      %v1318 = vmul.f32 %v868, %v1307
      %v1319 = vmul.f32 %v873, %v1307
      %v1320 = vmul.f32 %v876, %v1307
      %v1321 = vmul.f32 %v881, %v1307
      %v1322 = vmul.f32 %v884, %v1307
      %v1323 = vmul.f32 %v889, %v1307
      %v1324 = vmul.f32 %v892, %v1307
      %v1325 = vmul.f32 %v897, %v1307
      %v1326 = vmul.f32 %v900, %v1307
      %v1327 = vmul.f32 %v905, %v1307
      %v1328 = vmul.f32 %v908, %v1307
      %v1329 = vmul.f32 %v913, %v1307
      %v1330 = vmul.f32 %v916, %v1307
      %v1331 = vmul.f32 %v921, %v1307
      %v1332 = vmul.f32 %v924, %v1307
      %v1333 = vmul.f32 %v929, %v1307
      %v1334 = vmul.f32 %v932, %v1307
      %v1335 = vmul.f32 %v937, %v1307
      %v1336 = vmul.f32 %v940, %v1307
      %v1337 = vmul.f32 %v945, %v1307
      %v1338 = vmul.f32 %v948, %v1307
      %v1339 = vmul.f32 %v953, %v1307
      %v1340 = vmul.f32 %v956, %v1307
      %v1341 = vmul.f32 %v961, %v1307
      %v1342 = vmul.f32 %v964, %v1307
      %v1343 = vmul.f32 %v969, %v1307
      %v1344 = vmul.f32 %v972, %v1307
      %v1345 = vmul.f32 %v977, %v1307
      %v1346 = vmul.f32 %v980, %v1307
      %v1347 = vmul.f32 %v985, %v1307
      %v1348 = vmul.f32 %v988, %v1307
      %v1349 = vmul.f32 %v993, %v1307
      %v1350 = vmul.f32 %v996, %v1307
      %v1351 = vmul.f32 %v1001, %v1307
      %v1352 = vmul.f32 %v1004, %v1307
      %v1353 = vmul.f32 %v1009, %v1307
      %v1354 = vmul.f32 %v1012, %v1307
      %v1355 = vmul.f32 %v1017, %v1307
      %v1356 = vmul.f32 %v1020, %v1307
      %v1357 = vmul.f32 %v1025, %v1307
      %v1358 = vmul.f32 %v1028, %v1307
      %v1359 = vmul.f32 %v1033, %v1307
      %v1360 = vmul.f32 %v1036, %v1307
      %v1361 = vmul.f32 %v1041, %v1307
      %v1362 = vmul.f32 %v1044, %v1307
      %v1363 = vmul.f32 %v1049, %v1307
      %v1364 = vmul.f32 %v1052, %v1307
      %v1365 = vmul.f32 %v1057, %v1307
      %v1366 = vmul.f32 %v1060, %v1307
      %v1367 = vmul.f32 %v1065, %v1307
      %v1368 = vmul.f32 %v1068, %v1307
      %v1369 = vmul.f32 %v1073, %v1307
      %v1370 = vmul.f32 %v1076, %v1307
      %v1371 = vmul.f32 %v1081, %v1307
      %v1372 = vmul.f32 %v1084, %v1307
      %v1373 = vmul.f32 %v1089, %v1307
      %v1374 = vmul.f32 %v1092, %v1307
      %v1375 = vmul.f32 %v1097, %v1307
      %v1376 = vmul.f32 %v1100, %v1307
      %v1377 = vmul.f32 %v1105, %v1307
      %v1378 = vmul.f32 %v1108, %v1307
      %v1379 = vmul.f32 %v1113, %v1307
      %v1380 = vmul.f32 %v1116, %v1307
      %v1381 = vmul.f32 %v1121, %v1307
      %v1382 = vmul.f32 %v1124, %v1307
      %v1383 = vmul.f32 %v1129, %v1307
      %v1384 = vmul.f32 %v1132, %v1307
      %v1385 = vmul.f32 %v1137, %v1307
      %v1386 = vmul.f32 %v1140, %v1307
      %v1387 = vmul.f32 %v1145, %v1307
      %v1388 = vmul.f32 %v1148, %v1307
      %v1389 = vmul.f32 %v1153, %v1307
      %v1390 = vmul.f32 %v1156, %v1307
      %v1391 = vmul.f32 %v1161, %v1307
      %v1392 = vmul.f32 %v1164, %v1307
      %v1393 = vmul.f32 %v1169, %v1307
      %v1394 = vmul.f32 %v1172, %v1307
      %v1395 = vmul.f32 %v1177, %v1307
      %v1396 = vmul.f32 %v1180, %v1307
      %v1397 = vmul.f32 %v1185, %v1307
      %v1398 = vmul.f32 %v1188, %v1307
      %v1399 = vmul.f32 %v1193, %v1307
      %v1400 = vmul.f32 %v1196, %v1307
      %v1401 = vmul.f32 %v1201, %v1307
      %v1402 = vmul.f32 %v1204, %v1307
      %v1403 = vmul.f32 %v1209, %v1307
      %v1404 = vmul.f32 %v1212, %v1307
      %v1405 = vmul.f32 %v1217, %v1307
      %v1406 = vmul.f32 %v1220, %v1307
      %v1407 = vmul.f32 %v1225, %v1307
      %v1408 = vmul.f32 %v1228, %v1307
      %v1409 = vmul.f32 %v1233, %v1307
      %v1410 = vmul.f32 %v1236, %v1307
      %v1411 = vmul.f32 %v1241, %v1307
      %v1412 = vmul.f32 %v1244, %v1307
      %v1413 = vmul.f32 %v1249, %v1307
      %v1414 = vmul.f32 %v1252, %v1307
      %v1415 = vmul.f32 %v1257, %v1307
      %v1416 = vmul.f32 %v1260, %v1307
      %v1417 = vmul.f32 %v1265, %v1307
      %v1418 = vmul.f32 %v1268, %v1307
      %v1419 = vmul.f32 %v1273, %v1307
      %v1420 = vmul.f32 %v1276, %v1307
      %v1421 = vmul.f32 %v1281, %v1307
      %v1422 = vmul.f32 %v1284, %v1307
      %v1423 = vmul.f32 %v1289, %v1307
      %v1424 = vmul.f32 %v1292, %v1307
      %v1425 = vmul.f32 %v1297, %v1307
      %v1426 = vld [vmem:[%s3] sm:$0x1]
      %v1428 = vlaneseq
      %v1429 = vshrl.u32 %v1428, 7
      %v1430 = vsub.s32 0, %v1429
      %v1431 = vrot.slane %v1426, %v1430
      %v1433 = vadd.f32 %v1309, %v1431
      %v1434 = vadd.f32 %v1310, %v1431
      %v1435 = vadd.f32 %v1311, %v1431
      %v1436 = vadd.f32 %v1312, %v1431
      %v1437 = vadd.f32 %v1313, %v1431
      %v1438 = vadd.f32 %v1314, %v1431
      %v1439 = vadd.f32 %v1315, %v1431
      %v1440 = vadd.f32 %v1316, %v1431
      %v1441 = vadd.f32 %v1317, %v1431
      %v1442 = vadd.f32 %v1318, %v1431
      %v1443 = vadd.f32 %v1319, %v1431
      %v1444 = vadd.f32 %v1320, %v1431
      %v1445 = vadd.f32 %v1321, %v1431
      %v1446 = vadd.f32 %v1322, %v1431
      %v1447 = vadd.f32 %v1323, %v1431
      %v1448 = vadd.f32 %v1324, %v1431
      %v1449 = vadd.f32 %v1325, %v1431
      %v1450 = vadd.f32 %v1326, %v1431
      %v1451 = vadd.f32 %v1327, %v1431
      %v1452 = vadd.f32 %v1328, %v1431
      %v1453 = vadd.f32 %v1329, %v1431
      %v1454 = vadd.f32 %v1330, %v1431
      %v1455 = vadd.f32 %v1331, %v1431
      %v1456 = vadd.f32 %v1332, %v1431
      %v1457 = vadd.f32 %v1333, %v1431
      %v1458 = vadd.f32 %v1334, %v1431
      %v1459 = vadd.f32 %v1335, %v1431
      %v1460 = vadd.f32 %v1336, %v1431
      %v1461 = vadd.f32 %v1337, %v1431
      %v1462 = vadd.f32 %v1338, %v1431
      %v1463 = vadd.f32 %v1339, %v1431
      %v1464 = vadd.f32 %v1340, %v1431
      %v1465 = vadd.f32 %v1341, %v1431
      %v1466 = vadd.f32 %v1342, %v1431
      %v1467 = vadd.f32 %v1343, %v1431
      %v1468 = vadd.f32 %v1344, %v1431
      %v1469 = vadd.f32 %v1345, %v1431
      %v1470 = vadd.f32 %v1346, %v1431
      %v1471 = vadd.f32 %v1347, %v1431
      %v1472 = vadd.f32 %v1348, %v1431
      %v1473 = vadd.f32 %v1349, %v1431
      %v1474 = vadd.f32 %v1350, %v1431
      %v1475 = vadd.f32 %v1351, %v1431
      %v1476 = vadd.f32 %v1352, %v1431
      %v1477 = vadd.f32 %v1353, %v1431
      %v1478 = vadd.f32 %v1354, %v1431
      %v1479 = vadd.f32 %v1355, %v1431
      %v1480 = vadd.f32 %v1356, %v1431
      %v1481 = vadd.f32 %v1357, %v1431
      %v1482 = vadd.f32 %v1358, %v1431
      %v1483 = vadd.f32 %v1359, %v1431
      %v1484 = vadd.f32 %v1360, %v1431
      %v1485 = vadd.f32 %v1361, %v1431
      %v1486 = vadd.f32 %v1362, %v1431
      %v1487 = vadd.f32 %v1363, %v1431
      %v1488 = vadd.f32 %v1364, %v1431
      %v1489 = vadd.f32 %v1365, %v1431
      %v1490 = vadd.f32 %v1366, %v1431
      %v1491 = vadd.f32 %v1367, %v1431
      %v1492 = vadd.f32 %v1368, %v1431
      %v1493 = vadd.f32 %v1369, %v1431
      %v1494 = vadd.f32 %v1370, %v1431
      %v1495 = vadd.f32 %v1371, %v1431
      %v1496 = vadd.f32 %v1372, %v1431
      %v1497 = vadd.f32 %v1373, %v1431
      %v1498 = vadd.f32 %v1374, %v1431
      %v1499 = vadd.f32 %v1375, %v1431
      %v1500 = vadd.f32 %v1376, %v1431
      %v1501 = vadd.f32 %v1377, %v1431
      %v1502 = vadd.f32 %v1378, %v1431
      %v1503 = vadd.f32 %v1379, %v1431
      %v1504 = vadd.f32 %v1380, %v1431
      %v1505 = vadd.f32 %v1381, %v1431
      %v1506 = vadd.f32 %v1382, %v1431
      %v1507 = vadd.f32 %v1383, %v1431
      %v1508 = vadd.f32 %v1384, %v1431
      %v1509 = vadd.f32 %v1385, %v1431
      %v1510 = vadd.f32 %v1386, %v1431
      %v1511 = vadd.f32 %v1387, %v1431
      %v1512 = vadd.f32 %v1388, %v1431
      %v1513 = vadd.f32 %v1389, %v1431
      %v1514 = vadd.f32 %v1390, %v1431
      %v1515 = vadd.f32 %v1391, %v1431
      %v1516 = vadd.f32 %v1392, %v1431
      %v1517 = vadd.f32 %v1393, %v1431
      %v1518 = vadd.f32 %v1394, %v1431
      %v1519 = vadd.f32 %v1395, %v1431
      %v1520 = vadd.f32 %v1396, %v1431
      %v1521 = vadd.f32 %v1397, %v1431
      %v1522 = vadd.f32 %v1398, %v1431
      %v1523 = vadd.f32 %v1399, %v1431
      %v1524 = vadd.f32 %v1400, %v1431
      %v1525 = vadd.f32 %v1401, %v1431
      %v1526 = vadd.f32 %v1402, %v1431
      %v1527 = vadd.f32 %v1403, %v1431
      %v1528 = vadd.f32 %v1404, %v1431
      %v1529 = vadd.f32 %v1405, %v1431
      %v1530 = vadd.f32 %v1406, %v1431
      %v1531 = vadd.f32 %v1407, %v1431
      %v1532 = vadd.f32 %v1408, %v1431
      %v1533 = vadd.f32 %v1409, %v1431
      %v1534 = vadd.f32 %v1410, %v1431
      %v1535 = vadd.f32 %v1411, %v1431
      %v1536 = vadd.f32 %v1412, %v1431
      %v1537 = vadd.f32 %v1413, %v1431
      %v1538 = vadd.f32 %v1414, %v1431
      %v1539 = vadd.f32 %v1415, %v1431
      %v1540 = vadd.f32 %v1416, %v1431
      %v1541 = vadd.f32 %v1417, %v1431
      %v1542 = vadd.f32 %v1418, %v1431
      %v1543 = vadd.f32 %v1419, %v1431
      %v1544 = vadd.f32 %v1420, %v1431
      %v1545 = vadd.f32 %v1421, %v1431
      %v1546 = vadd.f32 %v1422, %v1431
      %v1547 = vadd.f32 %v1423, %v1431
      %v1548 = vadd.f32 %v1424, %v1431
      %v1549 = vadd.f32 %v1425, %v1431
      %v1550 = vmax.f32 %v1433, 0.0
      %v1551 = vmax.f32 %v1434, 0.0
      %v1552 = vmax.f32 %v1435, 0.0
      %v1553 = vmax.f32 %v1436, 0.0
      %v1554 = vmax.f32 %v1437, 0.0
      %v1555 = vmax.f32 %v1438, 0.0
      %v1556 = vmax.f32 %v1439, 0.0
      %v1557 = vmax.f32 %v1440, 0.0
      %v1558 = vmax.f32 %v1441, 0.0
      %v1559 = vmax.f32 %v1442, 0.0
      %v1560 = vmax.f32 %v1443, 0.0
      %v1561 = vmax.f32 %v1444, 0.0
      %v1562 = vmax.f32 %v1445, 0.0
      %v1563 = vmax.f32 %v1446, 0.0
      %v1564 = vmax.f32 %v1447, 0.0
      %v1565 = vmax.f32 %v1448, 0.0
      %v1566 = vmax.f32 %v1449, 0.0
      %v1567 = vmax.f32 %v1450, 0.0
      %v1568 = vmax.f32 %v1451, 0.0
      %v1569 = vmax.f32 %v1452, 0.0
      %v1570 = vmax.f32 %v1453, 0.0
      %v1571 = vmax.f32 %v1454, 0.0
      %v1572 = vmax.f32 %v1455, 0.0
      %v1573 = vmax.f32 %v1456, 0.0
      %v1574 = vmax.f32 %v1457, 0.0
      %v1575 = vmax.f32 %v1458, 0.0
      %v1576 = vmax.f32 %v1459, 0.0
      %v1577 = vmax.f32 %v1460, 0.0
      %v1578 = vmax.f32 %v1461, 0.0
      %v1579 = vmax.f32 %v1462, 0.0
      %v1580 = vmax.f32 %v1463, 0.0
      %v1581 = vmax.f32 %v1464, 0.0
      %v1582 = vmax.f32 %v1465, 0.0
      %v1583 = vmax.f32 %v1466, 0.0
      %v1584 = vmax.f32 %v1467, 0.0
      %v1585 = vmax.f32 %v1468, 0.0
      %v1586 = vmax.f32 %v1469, 0.0
      %v1587 = vmax.f32 %v1470, 0.0
      %v1588 = vmax.f32 %v1471, 0.0
      %v1589 = vmax.f32 %v1472, 0.0
      %v1590 = vmax.f32 %v1473, 0.0
      %v1591 = vmax.f32 %v1474, 0.0
      %v1592 = vmax.f32 %v1475, 0.0
      %v1593 = vmax.f32 %v1476, 0.0
      %v1594 = vmax.f32 %v1477, 0.0
      %v1595 = vmax.f32 %v1478, 0.0
      %v1596 = vmax.f32 %v1479, 0.0
      %v1597 = vmax.f32 %v1480, 0.0
      %v1598 = vmax.f32 %v1481, 0.0
      %v1599 = vmax.f32 %v1482, 0.0
      %v1600 = vmax.f32 %v1483, 0.0
      %v1601 = vmax.f32 %v1484, 0.0
      %v1602 = vmax.f32 %v1485, 0.0
      %v1603 = vmax.f32 %v1486, 0.0
      %v1604 = vmax.f32 %v1487, 0.0
      %v1605 = vmax.f32 %v1488, 0.0
      %v1606 = vmax.f32 %v1489, 0.0
      %v1607 = vmax.f32 %v1490, 0.0
      %v1608 = vmax.f32 %v1491, 0.0
      %v1609 = vmax.f32 %v1492, 0.0
      %v1610 = vmax.f32 %v1493, 0.0
      %v1611 = vmax.f32 %v1494, 0.0
      %v1612 = vmax.f32 %v1495, 0.0
      %v1613 = vmax.f32 %v1496, 0.0
      %v1614 = vmax.f32 %v1497, 0.0
      %v1615 = vmax.f32 %v1498, 0.0
      %v1616 = vmax.f32 %v1499, 0.0
      %v1617 = vmax.f32 %v1500, 0.0
      %v1618 = vmax.f32 %v1501, 0.0
      %v1619 = vmax.f32 %v1502, 0.0
      %v1620 = vmax.f32 %v1503, 0.0
      %v1621 = vmax.f32 %v1504, 0.0
      %v1622 = vmax.f32 %v1505, 0.0
      %v1623 = vmax.f32 %v1506, 0.0
      %v1624 = vmax.f32 %v1507, 0.0
      %v1625 = vmax.f32 %v1508, 0.0
      %v1626 = vmax.f32 %v1509, 0.0
      %v1627 = vmax.f32 %v1510, 0.0
      %v1628 = vmax.f32 %v1511, 0.0
      %v1629 = vmax.f32 %v1512, 0.0
      %v1630 = vmax.f32 %v1513, 0.0
      %v1631 = vmax.f32 %v1514, 0.0
      %v1632 = vmax.f32 %v1515, 0.0
      %v1633 = vmax.f32 %v1516, 0.0
      %v1634 = vmax.f32 %v1517, 0.0
      %v1635 = vmax.f32 %v1518, 0.0
      %v1636 = vmax.f32 %v1519, 0.0
      %v1637 = vmax.f32 %v1520, 0.0
      %v1638 = vmax.f32 %v1521, 0.0
      %v1639 = vmax.f32 %v1522, 0.0
      %v1640 = vmax.f32 %v1523, 0.0
      %v1641 = vmax.f32 %v1524, 0.0
      %v1642 = vmax.f32 %v1525, 0.0
      %v1643 = vmax.f32 %v1526, 0.0
      %v1644 = vmax.f32 %v1527, 0.0
      %v1645 = vmax.f32 %v1528, 0.0
      %v1646 = vmax.f32 %v1529, 0.0
      %v1647 = vmax.f32 %v1530, 0.0
      %v1648 = vmax.f32 %v1531, 0.0
      %v1649 = vmax.f32 %v1532, 0.0
      %v1650 = vmax.f32 %v1533, 0.0
      %v1651 = vmax.f32 %v1534, 0.0
      %v1652 = vmax.f32 %v1535, 0.0
      %v1653 = vmax.f32 %v1536, 0.0
      %v1654 = vmax.f32 %v1537, 0.0
      %v1655 = vmax.f32 %v1538, 0.0
      %v1656 = vmax.f32 %v1539, 0.0
      %v1657 = vmax.f32 %v1540, 0.0
      %v1658 = vmax.f32 %v1541, 0.0
      %v1659 = vmax.f32 %v1542, 0.0
      %v1660 = vmax.f32 %v1543, 0.0
      %v1661 = vmax.f32 %v1544, 0.0
      %v1662 = vmax.f32 %v1545, 0.0
      %v1663 = vmax.f32 %v1546, 0.0
      %v1664 = vmax.f32 %v1547, 0.0
      %v1665 = vmax.f32 %v1548, 0.0
      %v1666 = vmax.f32 %v1549, 0.0
      %vm1667 = vcmask 523264
      %1668 = vst.msk [vmem:[%s199] sm:$0xff] %vm1667, %v1550
      %1669 = vst.msk [vmem:[%s199 + $0x8] sm:$0xff] %vm1667, %v1551
      %1670 = vst.msk [vmem:[%s199 + $0x10] sm:$0xff] %vm1667, %v1552
      %1671 = vst.msk [vmem:[%s199 + $0x18] sm:$0xff] %vm1667, %v1553
      %1672 = vst.msk [vmem:[%s199 + $0x20] sm:$0xff] %vm1667, %v1554
      %1673 = vst.msk [vmem:[%s199 + $0x28] sm:$0xff] %vm1667, %v1555
      %1674 = vst.msk [vmem:[%s199 + $0x30] sm:$0xff] %vm1667, %v1556
      %1675 = vst.msk [vmem:[%s199 + $0x38] sm:$0xff] %vm1667, %v1557
      %1676 = vst.msk [vmem:[%s199 + $0x40] sm:$0xff] %vm1667, %v1558
      %1677 = vst.msk [vmem:[%s199 + $0x48] sm:$0xff] %vm1667, %v1559
      %1678 = vst.msk [vmem:[%s199 + $0x50] sm:$0xff] %vm1667, %v1560
      %1679 = vst.msk [vmem:[%s199 + $0x58] sm:$0xff] %vm1667, %v1561
      %1680 = vst.msk [vmem:[%s199 + $0x60] sm:$0xff] %vm1667, %v1562
      %1681 = vst.msk [vmem:[%s199 + $0x68] sm:$0xff] %vm1667, %v1563
      %1682 = vst.msk [vmem:[%s199 + $0x70] sm:$0xff] %vm1667, %v1564
      %1683 = vst.msk [vmem:[%s199 + $0x78] sm:$0xff] %vm1667, %v1565
      %1684 = vst.msk [vmem:[%s199 + $0x80] sm:$0xff] %vm1667, %v1566
      %1685 = vst.msk [vmem:[%s199 + $0x88] sm:$0xff] %vm1667, %v1567
      %1686 = vst.msk [vmem:[%s199 + $0x90] sm:$0xff] %vm1667, %v1568
      %1687 = vst.msk [vmem:[%s199 + $0x98] sm:$0xff] %vm1667, %v1569
      %1688 = vst.msk [vmem:[%s199 + $0xa0] sm:$0xff] %vm1667, %v1570
      %1689 = vst.msk [vmem:[%s199 + $0xa8] sm:$0xff] %vm1667, %v1571
      %1690 = vst.msk [vmem:[%s199 + $0xb0] sm:$0xff] %vm1667, %v1572
      %1691 = vst.msk [vmem:[%s199 + $0xb8] sm:$0xff] %vm1667, %v1573
      %1692 = vst.msk [vmem:[%s199 + $0xc0] sm:$0xff] %vm1667, %v1574
      %1693 = vst.msk [vmem:[%s199 + $0xc8] sm:$0xff] %vm1667, %v1575
      %1694 = vst.msk [vmem:[%s199 + $0xd0] sm:$0xff] %vm1667, %v1576
      %1695 = vst.msk [vmem:[%s199 + $0xd8] sm:$0xff] %vm1667, %v1577
      %1696 = vst.msk [vmem:[%s199 + $0xe0] sm:$0xff] %vm1667, %v1578
      %1697 = vst.msk [vmem:[%s199 + $0xe8] sm:$0xff] %vm1667, %v1579
      %1698 = vst.msk [vmem:[%s199 + $0xf0] sm:$0xff] %vm1667, %v1580
      %1699 = vst.msk [vmem:[%s199 + $0xf8] sm:$0xff] %vm1667, %v1581
      %1700 = vst.msk [vmem:[%s199 + $0x100] sm:$0xff] %vm1667, %v1582
      %1701 = vst.msk [vmem:[%s199 + $0x108] sm:$0xff] %vm1667, %v1583
      %1702 = vst.msk [vmem:[%s199 + $0x110] sm:$0xff] %vm1667, %v1584
      %1703 = vst.msk [vmem:[%s199 + $0x118] sm:$0xff] %vm1667, %v1585
      %1704 = vst.msk [vmem:[%s199 + $0x120] sm:$0xff] %vm1667, %v1586
      %1705 = vst.msk [vmem:[%s199 + $0x128] sm:$0xff] %vm1667, %v1587
      %1706 = vst.msk [vmem:[%s199 + $0x130] sm:$0xff] %vm1667, %v1588
      %1707 = vst.msk [vmem:[%s199 + $0x138] sm:$0xff] %vm1667, %v1589
      %1708 = vst.msk [vmem:[%s199 + $0x140] sm:$0xff] %vm1667, %v1590
      %1709 = vst.msk [vmem:[%s199 + $0x148] sm:$0xff] %vm1667, %v1591
      %1710 = vst.msk [vmem:[%s199 + $0x150] sm:$0xff] %vm1667, %v1592
      %1711 = vst.msk [vmem:[%s199 + $0x158] sm:$0xff] %vm1667, %v1593
      %1712 = vst.msk [vmem:[%s199 + $0x160] sm:$0xff] %vm1667, %v1594
      %1713 = vst.msk [vmem:[%s199 + $0x168] sm:$0xff] %vm1667, %v1595
      %1714 = vst.msk [vmem:[%s199 + $0x170] sm:$0xff] %vm1667, %v1596
      %1715 = vst.msk [vmem:[%s199 + $0x178] sm:$0xff] %vm1667, %v1597
      %1716 = vst.msk [vmem:[%s199 + $0x180] sm:$0xff] %vm1667, %v1598
      %1717 = vst.msk [vmem:[%s199 + $0x188] sm:$0xff] %vm1667, %v1599
      %1718 = vst.msk [vmem:[%s199 + $0x190] sm:$0xff] %vm1667, %v1600
      %1719 = vst.msk [vmem:[%s199 + $0x198] sm:$0xff] %vm1667, %v1601
      %1720 = vst.msk [vmem:[%s199 + $0x1a0] sm:$0xff] %vm1667, %v1602
      %1721 = vst.msk [vmem:[%s199 + $0x1a8] sm:$0xff] %vm1667, %v1603
      %1722 = vst.msk [vmem:[%s199 + $0x1b0] sm:$0xff] %vm1667, %v1604
      %1723 = vst.msk [vmem:[%s199 + $0x1b8] sm:$0xff] %vm1667, %v1605
      %1724 = vst.msk [vmem:[%s199 + $0x1c0] sm:$0xff] %vm1667, %v1606
      %1725 = vst.msk [vmem:[%s199 + $0x1c8] sm:$0xff] %vm1667, %v1607
      %1726 = vst.msk [vmem:[%s199 + $0x1d0] sm:$0xff] %vm1667, %v1608
      %1727 = vst.msk [vmem:[%s199 + $0x1d8] sm:$0xff] %vm1667, %v1609
      %1728 = vst.msk [vmem:[%s199 + $0x1e0] sm:$0xff] %vm1667, %v1610
      %1729 = vst.msk [vmem:[%s199 + $0x1e8] sm:$0xff] %vm1667, %v1611
      %1730 = vst.msk [vmem:[%s199 + $0x1f0] sm:$0xff] %vm1667, %v1612
      %1731 = vst.msk [vmem:[%s199 + $0x1f8] sm:$0xff] %vm1667, %v1613
      %1732 = vst.msk [vmem:[%s199 + $0x200] sm:$0xff] %vm1667, %v1614
      %1733 = vst.msk [vmem:[%s199 + $0x208] sm:$0xff] %vm1667, %v1615
      %1734 = vst.msk [vmem:[%s199 + $0x210] sm:$0xff] %vm1667, %v1616
      %1735 = vst.msk [vmem:[%s199 + $0x218] sm:$0xff] %vm1667, %v1617
      %1736 = vst.msk [vmem:[%s199 + $0x220] sm:$0xff] %vm1667, %v1618
      %1737 = vst.msk [vmem:[%s199 + $0x228] sm:$0xff] %vm1667, %v1619
      %1738 = vst.msk [vmem:[%s199 + $0x230] sm:$0xff] %vm1667, %v1620
      %1739 = vst.msk [vmem:[%s199 + $0x238] sm:$0xff] %vm1667, %v1621
      %1740 = vst.msk [vmem:[%s199 + $0x240] sm:$0xff] %vm1667, %v1622
      %1741 = vst.msk [vmem:[%s199 + $0x248] sm:$0xff] %vm1667, %v1623
      %1742 = vst.msk [vmem:[%s199 + $0x250] sm:$0xff] %vm1667, %v1624
      %1743 = vst.msk [vmem:[%s199 + $0x258] sm:$0xff] %vm1667, %v1625
      %1744 = vst.msk [vmem:[%s199 + $0x260] sm:$0xff] %vm1667, %v1626
      %1745 = vst.msk [vmem:[%s199 + $0x268] sm:$0xff] %vm1667, %v1627
      %1746 = vst.msk [vmem:[%s199 + $0x270] sm:$0xff] %vm1667, %v1628
      %1747 = vst.msk [vmem:[%s199 + $0x278] sm:$0xff] %vm1667, %v1629
      %1748 = vst.msk [vmem:[%s199 + $0x280] sm:$0xff] %vm1667, %v1630
      %1749 = vst.msk [vmem:[%s199 + $0x288] sm:$0xff] %vm1667, %v1631
      %1750 = vst.msk [vmem:[%s199 + $0x290] sm:$0xff] %vm1667, %v1632
      %1751 = vst.msk [vmem:[%s199 + $0x298] sm:$0xff] %vm1667, %v1633
      %1752 = vst.msk [vmem:[%s199 + $0x2a0] sm:$0xff] %vm1667, %v1634
      %1753 = vst.msk [vmem:[%s199 + $0x2a8] sm:$0xff] %vm1667, %v1635
      %1754 = vst.msk [vmem:[%s199 + $0x2b0] sm:$0xff] %vm1667, %v1636
      %1755 = vst.msk [vmem:[%s199 + $0x2b8] sm:$0xff] %vm1667, %v1637
      %1756 = vst.msk [vmem:[%s199 + $0x2c0] sm:$0xff] %vm1667, %v1638
      %1757 = vst.msk [vmem:[%s199 + $0x2c8] sm:$0xff] %vm1667, %v1639
      %1758 = vst.msk [vmem:[%s199 + $0x2d0] sm:$0xff] %vm1667, %v1640
      %1759 = vst.msk [vmem:[%s199 + $0x2d8] sm:$0xff] %vm1667, %v1641
      %1760 = vst.msk [vmem:[%s199 + $0x2e0] sm:$0xff] %vm1667, %v1642
      %1761 = vst.msk [vmem:[%s199 + $0x2e8] sm:$0xff] %vm1667, %v1643
      %1762 = vst.msk [vmem:[%s199 + $0x2f0] sm:$0xff] %vm1667, %v1644
      %1763 = vst.msk [vmem:[%s199 + $0x2f8] sm:$0xff] %vm1667, %v1645
      %1764 = vst.msk [vmem:[%s199 + $0x300] sm:$0xff] %vm1667, %v1646
      %1765 = vst.msk [vmem:[%s199 + $0x308] sm:$0xff] %vm1667, %v1647
      %1766 = vst.msk [vmem:[%s199 + $0x310] sm:$0xff] %vm1667, %v1648
      %1767 = vst.msk [vmem:[%s199 + $0x318] sm:$0xff] %vm1667, %v1649
      %1768 = vst.msk [vmem:[%s199 + $0x320] sm:$0xff] %vm1667, %v1650
      %1769 = vst.msk [vmem:[%s199 + $0x328] sm:$0xff] %vm1667, %v1651
      %1770 = vst.msk [vmem:[%s199 + $0x330] sm:$0xff] %vm1667, %v1652
      %1771 = vst.msk [vmem:[%s199 + $0x338] sm:$0xff] %vm1667, %v1653
      %1772 = vst.msk [vmem:[%s199 + $0x340] sm:$0xff] %vm1667, %v1654
      %1773 = vst.msk [vmem:[%s199 + $0x348] sm:$0xff] %vm1667, %v1655
      %1774 = vst.msk [vmem:[%s199 + $0x350] sm:$0xff] %vm1667, %v1656
      %1775 = vst.msk [vmem:[%s199 + $0x358] sm:$0xff] %vm1667, %v1657
      %1776 = vst.msk [vmem:[%s199 + $0x360] sm:$0xff] %vm1667, %v1658
      %1777 = vst.msk [vmem:[%s199 + $0x368] sm:$0xff] %vm1667, %v1659
      %1778 = vst.msk [vmem:[%s199 + $0x370] sm:$0xff] %vm1667, %v1660
      %1779 = vst.msk [vmem:[%s199 + $0x378] sm:$0xff] %vm1667, %v1661
      %1780 = vst.msk [vmem:[%s199 + $0x380] sm:$0xff] %vm1667, %v1662
      %1781 = vst.msk [vmem:[%s199 + $0x388] sm:$0xff] %vm1667, %v1663
      %1782 = vst.msk [vmem:[%s199 + $0x390] sm:$0xff] %vm1667, %v1664
      %1783 = vst.msk [vmem:[%s199 + $0x398] sm:$0xff] %vm1667, %v1665
      %1784 = vst.msk [vmem:[%s199 + $0x3a0] sm:$0xff] %vm1667, %v1666
      %s1785 = smul.u32 117, %s15
      %p1786 = scmp.lt.s32.totalorder %s1785, 233
      %s1787 = scalar_select %p1786, %s1785, 233
      %s1788 = smul.addr %s1787, 8
      %s1789 = scalar_lea.vmem %s4, %s1788
      // Predicated region
      $region37: #{deconv_unit_crop.1} parent=35 // pred_check
        %p1790 = pneg %p122
      $region38: #{deconv_unit_crop.1} parent=35 // pred_check_branch
        %1792 = sbr.rel (%p1790) target = $region40
      $region39: #{deconv_unit_crop.1} parent=35 // pred_region
        %s1793 = smul.u32 117, %s15
      $region40: #{deconv_unit_crop.1} parent=35 // pred_fallthru
        _
    $region36: #{deconv_unit_crop.1} parent=5 // pred_fallthru
      _
    %p1794 = scmp.le.s32.totalorder 2, %s10
    // Predicated region
    $region41: #{deconv_unit_crop.1} parent=5 // pred_check
      %p1795 = pneg %p1794
    $region42: #{deconv_unit_crop.1} parent=5 // pred_check_branch
      %1797 = sbr.rel (%p1795) target = $region44
    $region43: #{deconv_unit_crop.1} parent=5 // pred_region
      %s1798 = ssub.s32 %s10, 2
      // Predicated region
      $region45: #{deconv_unit_crop.1} parent=43 // pred_check
        %p1799 = pneg %p128
      $region46: #{deconv_unit_crop.1} parent=43 // pred_check_branch
        %1801 = sbr.rel (%p1799) target = $region48
      $region47: #{deconv_unit_crop.1} parent=43 // pred_region
        %s1802 = smul.u32 117, %s16
        %p1803 = scmp.lt.s32.totalorder %s1802, 233
        %s1804 = scalar_select %p1803, %s1802, 233
        %s1805 = smul.addr %s1804, 8
        %s1806 = scalar_lea.vmem %s4, %s1805
      $region48: #{deconv_unit_crop.1} parent=43 // pred_fallthru
        _
    $region44: #{deconv_unit_crop.1} parent=5 // pred_fallthru
      _
  $region6: #{deconv_unit_crop.1} parent=0 // loop_footer
    %s14 = sadd.s32 1, %s10
  $region7: #{deconv_unit_crop.1} parent=0 // loop_footer_branch
    %9 = sbr.rel target = $region3
  $region8: #{deconv_unit_crop.1} parent=0 // loop_exit
    _

</llo_original>
